<compile_context>
chip_gen: v5e
topology: v5e:2x2
jax: 0.10.0
libtpu: 0.0.40
codegen_flags: <defaults>
</compile_context>

<pallas_src>
import math
from functools import partial

import jax
import jax.numpy as jnp
from jax.experimental import pallas as pl
from jax.experimental.pallas import tpu as pltpu


_LANE = 128
_AGG_TILE = 512          # row/k tile for the tiled path (v7x-safe; 1024 ok on v5e/v6e)
_FUSE_MAX_NODES = 2048   # below this, run the whole graph encoder as ONE kernel
_VMEM_LIMIT = 48 * 1024 * 1024   # < v7x's 64 MiB physical VMEM
_VMEM = pl.BlockSpec(memory_space=pltpu.MemorySpace.VMEM)


def _round_up(x, m):
    return (x + m - 1) // m * m


def _pad2(arr, rows, cols):
    r, c = arr.shape
    return jnp.pad(arr, ((0, rows - r), (0, cols - c)))


# ----------------------------------------------------------------------------
# Kernel 1 (small/medium graphs): fully-fused graph encoder, single launch.
#   A (int8, resident) -> 3x [T = d*(H@W); H' = act(d*(A@T)+b)] -> pool -> MLP
# ----------------------------------------------------------------------------
def fused_graph_kernel(a_ref, d_ref, x_ref, pool_ref,
                       w1, b1, w2, b2, w3, b3, wh1, bh1, wh2, bh2, o_ref):
    # int8 {0,1} adjacency -> bf16 on the VPU (two-step cast keeps lowering simple)
    a = a_ref[...].astype(jnp.float32).astype(jnp.bfloat16)
    d = d_ref[...]                                     # (N, 1) f32

    def gcn(h_bf16, w, b, relu):
        t = jnp.dot(h_bf16, w[...], preferred_element_type=jnp.float32)
        t = (d * t).astype(jnp.bfloat16)               # fold row-side D^{-1/2}
        agg = jnp.dot(a, t, preferred_element_type=jnp.float32)
        out = d * agg + b[...]
        if relu:
            out = jnp.maximum(out, 0.0)
        return out.astype(jnp.bfloat16)

    h = gcn(x_ref[...], w1, b1, True)
    h = gcn(h, w2, b2, True)
    h = gcn(h, w3, b3, False)

    g = jnp.dot(pool_ref[...], h, preferred_element_type=jnp.float32)
    g = jnp.maximum(
        jnp.dot(g.astype(jnp.bfloat16), wh1[...],
                preferred_element_type=jnp.float32) + bh1[...], 0.0)
    o_ref[...] = (jnp.dot(g.astype(jnp.bfloat16), wh2[...],
                          preferred_element_type=jnp.float32) + bh2[...])


def fused_graph_encoder(a_int8, d, x, pool, gpp):
    g_pad = pool.shape[0]
    nout_p = gpp['wh2'].shape[1]
    args = (a_int8, d, x, pool,
            gpp['w1'], gpp['b1'], gpp['w2'], gpp['b2'], gpp['w3'], gpp['b3'],
            gpp['wh1'], gpp['bh1'], gpp['wh2'], gpp['bh2'])
    return pl.pallas_call(
        fused_graph_kernel,
        out_shape=jax.ShapeDtypeStruct((g_pad, nout_p), jnp.float32),
        in_specs=[_VMEM] * len(args),
        out_specs=_VMEM,
        compiler_params=pltpu.CompilerParams(vmem_limit_bytes=_VMEM_LIMIT),
    )(*args)


# ----------------------------------------------------------------------------
# Kernel 2 (large graphs): one GCN layer, transform fused into aggregation.
#   grid = (rows, k); A streamed (int8), H / d / W resident in VMEM.
# ----------------------------------------------------------------------------
def gcn_layer_kernel(a_ref, h_ref, d_ref, w_ref, b_ref, o_ref, acc_ref, *,
                     tm, tk, apply_relu):
    i = pl.program_id(0)
    k = pl.program_id(1)

    @pl.when(k == 0)
    def _():
        acc_ref[...] = jnp.zeros_like(acc_ref)

    ks = pl.multiple_of(k * tk, tk)
    h_blk = h_ref[pl.ds(ks, tk), :]                          # bf16 (tk, Cin)
    d_k = d_ref[pl.ds(ks, tk), :]                            # f32  (tk, 1)
    t_blk = jnp.dot(h_blk, w_ref[...], preferred_element_type=jnp.float32)
    t_blk = (d_k * t_blk).astype(jnp.bfloat16)               # (tk, Cout)
    a_blk = a_ref[...].astype(jnp.float32).astype(jnp.bfloat16)
    acc_ref[...] += jnp.dot(a_blk, t_blk, preferred_element_type=jnp.float32)

    @pl.when(k == pl.num_programs(1) - 1)
    def _():
        rs = pl.multiple_of(i * tm, tm)
        out = d_ref[pl.ds(rs, tm), :] * acc_ref[...] + b_ref[...]
        if apply_relu:
            out = jnp.maximum(out, 0.0)
        o_ref[...] = out.astype(o_ref.dtype)


def gcn_layer(a_int8, h, d, w, b, *, tm, tk, apply_relu):
    n_pad = a_int8.shape[0]
    cin = h.shape[1]
    cout = w.shape[1]
    return pl.pallas_call(
        partial(gcn_layer_kernel, tm=tm, tk=tk, apply_relu=apply_relu),
        out_shape=jax.ShapeDtypeStruct((n_pad, cout), jnp.bfloat16),
        grid_spec=pltpu.PrefetchScalarGridSpec(
            num_scalar_prefetch=0,
            grid=(n_pad // tm, n_pad // tk),
            in_specs=[
                pl.BlockSpec((tm, tk), lambda i, k: (i, k)),        # A stream (int8)
                pl.BlockSpec((n_pad, cin), lambda i, k: (0, 0)),    # H resident
                pl.BlockSpec((n_pad, 1), lambda i, k: (0, 0)),      # d resident
                pl.BlockSpec((cin, cout), lambda i, k: (0, 0)),     # W resident
                pl.BlockSpec((1, cout), lambda i, k: (0, 0)),       # bias
            ],
            out_specs=pl.BlockSpec((tm, cout), lambda i, k: (i, 0)),
            scratch_shapes=[pltpu.VMEM((tm, cout), jnp.float32)],
        ),
        compiler_params=pltpu.CompilerParams(
            dimension_semantics=("parallel", "arbitrary"),
            vmem_limit_bytes=_VMEM_LIMIT),
    )(a_int8, h, d, w, b)


# ----------------------------------------------------------------------------
# Kernel 3 (large graphs): global mean pool (k-tiled) + Linear->ReLU->Linear
# ----------------------------------------------------------------------------
def pool_head_kernel(p_ref, h_ref, wh1_ref, bh1_ref, wh2_ref, bh2_ref,
                     o_ref, acc_ref):
    k = pl.program_id(0)

    @pl.when(k == 0)
    def _():
        acc_ref[...] = jnp.zeros_like(acc_ref)

    acc_ref[...] += jnp.dot(p_ref[...], h_ref[...],
                            preferred_element_type=jnp.float32)

    @pl.when(k == pl.num_programs(0) - 1)
    def _():
        g = acc_ref[...].astype(jnp.bfloat16)
        g = jnp.maximum(
            jnp.dot(g, wh1_ref[...], preferred_element_type=jnp.float32)
            + bh1_ref[...], 0.0)
        o_ref[...] = (jnp.dot(g.astype(jnp.bfloat16), wh2_ref[...],
                              preferred_element_type=jnp.float32)
                      + bh2_ref[...])


def pool_and_head(pool, h, wh1, bh1, wh2, bh2, *, tk):
    g_pad, n_pad = pool.shape
    c = h.shape[1]
    nhid_p = wh1.shape[1]
    nout_p = wh2.shape[1]
    return pl.pallas_call(
        pool_head_kernel,
        out_shape=jax.ShapeDtypeStruct((g_pad, nout_p), jnp.float32),
        grid_spec=pltpu.PrefetchScalarGridSpec(
            num_scalar_prefetch=0,
            grid=(n_pad // tk,),
            in_specs=[
                pl.BlockSpec((g_pad, tk), lambda k: (0, k)),
                pl.BlockSpec((tk, c), lambda k: (k, 0)),
                pl.BlockSpec((c, nhid_p), lambda k: (0, 0)),
                pl.BlockSpec((1, nhid_p), lambda k: (0, 0)),
                pl.BlockSpec((nhid_p, nout_p), lambda k: (0, 0)),
                pl.BlockSpec((1, nout_p), lambda k: (0, 0)),
            ],
            out_specs=pl.BlockSpec((g_pad, nout_p), lambda k: (0, 0)),
            scratch_shapes=[pltpu.VMEM((g_pad, c), jnp.float32)],
        ),
        compiler_params=pltpu.CompilerParams(
            dimension_semantics=("arbitrary",),
            vmem_limit_bytes=_VMEM_LIMIT),
    )(pool, h, wh1, bh1, wh2, bh2)


# ----------------------------------------------------------------------------
# Kernel 4: text encoder (synthetic 1-layer BERT block, CLS-row only)
# ----------------------------------------------------------------------------
def _layer_norm(x, gamma, beta, eps=1e-12):
    mu = jnp.mean(x, axis=-1, keepdims=True)
    var = jnp.mean((x - mu) ** 2, axis=-1, keepdims=True)
    return (x - mu) * jax.lax.rsqrt(var + eps) * gamma + beta


def text_encoder_kernel(x_ref, mask_ref,
                        wq, bq, wk, bk, wv, bv, wo, bo, g1, be1,
                        wf1, bf1, wf2, bf2, g2, be2, o_ref):
    x3 = x_ref[...]                                      # [B, S, H] f32
    B, S, H = x3.shape
    x2 = x3.reshape(B * S, H).astype(jnp.bfloat16)       # flattened 2-D matmuls
    x_cls = x3[:, 0, :]                                  # [B, H] f32

    # full-sequence K / V projections (single lane-dense matmul each)
    k3 = (jnp.dot(x2, wk[...], preferred_element_type=jnp.float32)
          + bk[...]).reshape(B, S, H)
    v3 = (jnp.dot(x2, wv[...], preferred_element_type=jnp.float32)
          + bv[...]).reshape(B, S, H)

    # only the CLS query row is consumed downstream
    q = (jnp.dot(x_cls.astype(jnp.bfloat16), wq[...],
                 preferred_element_type=jnp.float32) + bq[...])      # [B, H]

    # M=1 attention on the VPU/XLU (avoids 1-row MXU matmuls)
    scores = jnp.sum(q[:, None, :] * k3, axis=-1) * (1.0 / math.sqrt(H))  # [B,S]
    scores = scores + (mask_ref[...] - 1.0) * 1e9

    m = jnp.max(scores, axis=-1, keepdims=True)
    p = jnp.exp(scores - m)
    p = p * pl.reciprocal(jnp.sum(p, axis=-1, keepdims=True), approx=True)

    ctx = jnp.sum(p[:, :, None] * v3, axis=1)                            # [B,H]
    attn = jnp.dot(ctx.astype(jnp.bfloat16), wo[...],
                   preferred_element_type=jnp.float32) + bo[...]

    h = _layer_norm(x_cls + attn, g1[...], be1[...])

    ff = jnp.maximum(
        jnp.dot(h.astype(jnp.bfloat16), wf1[...],
                preferred_element_type=jnp.float32) + bf1[...], 0.0)
    ff = jnp.dot(ff.astype(jnp.bfloat16), wf2[...],
                 preferred_element_type=jnp.float32) + bf2[...]

    o_ref[...] = _layer_norm(h + ff, g2[...], be2[...])


def run_text_encoder(emb, mask, tp):
    args = (emb, mask,
            tp['wq'], tp['bq'], tp['wk'], tp['bk'], tp['wv'], tp['bv'],
            tp['wo'], tp['bo'], tp['g1'], tp['be1'],
            tp['wf1'], tp['bf1'], tp['wf2'], tp['bf2'], tp['g2'], tp['be2'])
    B, _, H = emb.shape
    return pl.pallas_call(
        text_encoder_kernel,
        out_shape=jax.ShapeDtypeStruct((B, H), jnp.float32),
        in_specs=[_VMEM] * len(args),
        out_specs=_VMEM,
        compiler_params=pltpu.CompilerParams(vmem_limit_bytes=_VMEM_LIMIT),
    )(*args)


# ----------------------------------------------------------------------------
# Graph encoder forward (wrapper glue + kernels)
# ----------------------------------------------------------------------------
def graph_encoder_forward(x_nodes, edge_index, batch_vec, num_graphs,
                          gpp, nout, *, force_tiled=False, tile=None,
                          min_pad=None):
    n_nodes = x_nodes.shape[0]
    f_pad = gpp['w1'].shape[0]           # lane-padded feature dim
    fused = (n_nodes <= _FUSE_MAX_NODES) and not force_tiled
    tile = tile or _AGG_TILE
    if fused:
        n_pad = _round_up(max(n_nodes, 1), _LANE)
    else:
        n_pad = _round_up(max(n_nodes, 1), tile)
    if min_pad is not None:
        n_pad = max(n_pad, min_pad)

    # --- adjacency: scatter {0,1} directly into int8 (no dense f32 build);
    #     degrees from a scatter-add over edges (simple-graph assumption,
    #     consistent with the clamped adjacency) ----------------------------
    a_int8 = jnp.zeros((n_pad, n_pad), jnp.int8)
    a_int8 = a_int8.at[edge_index[0], edge_index[1]].set(1)
    a_int8 = a_int8.at[edge_index[1], edge_index[0]].set(1)
    diag = jnp.arange(n_nodes)
    a_int8 = a_int8.at[diag, diag].set(1)                 # self loops (real nodes)
    deg = jnp.zeros((n_pad,), jnp.float32)
    deg = deg.at[edge_index[0]].add(1.0)
    deg = deg.at[edge_index[1]].add(1.0)
    deg = deg.at[diag].add(1.0)
    d = jax.lax.rsqrt(jnp.maximum(deg, 1.0))[:, None]     # [n_pad, 1] f32

    # --- padded node features (bf16 MXU input, lane-dense feature dim) ------
    x = jnp.zeros((n_pad, f_pad), jnp.bfloat16)
    x = x.at[:n_nodes, :x_nodes.shape[1]].set(x_nodes.astype(jnp.bfloat16))

    # --- per-graph mean-pool matrix ------------------------------------------
    g_pad = _round_up(max(num_graphs, 8), 8)
    one_hot = (batch_vec[None, :] ==
               jnp.arange(g_pad)[:, None]).astype(jnp.float32)
    counts = jnp.maximum(jnp.sum(one_hot, axis=1, keepdims=True), 1.0)
    pool = jnp.pad(one_hot / counts,
                   ((0, 0), (0, n_pad - n_nodes))).astype(jnp.bfloat16)

    if fused:
        out = fused_graph_encoder(a_int8, d, x, pool, gpp)
    else:
        h = gcn_layer(a_int8, x, d, gpp['w1'], gpp['b1'],
                      tm=tile, tk=tile, apply_relu=True)
        h = gcn_layer(a_int8, h, d, gpp['w2'], gpp['b2'],
                      tm=tile, tk=tile, apply_relu=True)
        h = gcn_layer(a_int8, h, d, gpp['w3'], gpp['b3'],
                      tm=tile, tk=tile, apply_relu=False)
        out = pool_and_head(pool, h, gpp['wh1'], gpp['bh1'],
                            gpp['wh2'], gpp['bh2'], tk=tile)
    return out[:num_graphs, :nout]


def model_baseline_forward(graph_batch, input_ids, attention_mask,
                           gpp, text_params, text_tables, num_graphs, nout):
    x_nodes, edge_index, batch_vec = graph_batch
    graph_encoded = graph_encoder_forward(x_nodes, edge_index, batch_vec,
                                          num_graphs, gpp, nout)

    tok_emb, pos_emb = text_tables
    seq_len = input_ids.shape[1]
    emb = jnp.take(tok_emb, input_ids, axis=0) + pos_emb[None, :seq_len, :]
    mask_f = attention_mask.astype(jnp.float32)
    text_encoded = run_text_encoder(emb, mask_f, text_params)
    return graph_encoded, text_encoded


# ----------------------------------------------------------------------------
# Deterministic parameter construction + lane-padding / bf16 preparation
# ----------------------------------------------------------------------------
def _init_params(key, num_node_features, nout, nhid, graph_hidden_channels,
                 hidden, ffn_dim, vocab, max_seq):
    ks = jax.random.split(key, 16)

    def w(k, shape, scale=0.1):
        return (scale * jax.random.normal(k, shape)).astype(jnp.float32)

    C = graph_hidden_channels
    graph_params = dict(
        w1=w(ks[0], (num_node_features, C)), b1=jnp.zeros((C,), jnp.float32),
        w2=w(ks[1], (C, C)),                 b2=jnp.zeros((C,), jnp.float32),
        w3=w(ks[2], (C, C)),                 b3=jnp.zeros((C,), jnp.float32),
        wh1=w(ks[3], (C, nhid)),             bh1=jnp.zeros((nhid,), jnp.float32),
        wh2=w(ks[4], (nhid, nout)),          bh2=jnp.zeros((nout,), jnp.float32),
    )

    H, F = hidden, ffn_dim
    bf = jnp.bfloat16
    text_params = dict(
        wq=w(ks[5], (H, H)).astype(bf),  bq=jnp.zeros((1, H), jnp.float32),
        wk=w(ks[6], (H, H)).astype(bf),  bk=jnp.zeros((1, H), jnp.float32),
        wv=w(ks[7], (H, H)).astype(bf),  bv=jnp.zeros((1, H), jnp.float32),
        wo=w(ks[8], (H, H)).astype(bf),  bo=jnp.zeros((1, H), jnp.float32),
        g1=jnp.ones((1, H), jnp.float32), be1=jnp.zeros((1, H), jnp.float32),
        wf1=w(ks[9], (H, F)).astype(bf),  bf1=jnp.zeros((1, F), jnp.float32),
        wf2=w(ks[10], (F, H)).astype(bf), bf2=jnp.zeros((1, H), jnp.float32),
        g2=jnp.ones((1, H), jnp.float32), be2=jnp.zeros((1, H), jnp.float32),
    )
    text_tables = (w(ks[11], (vocab, H)), w(ks[12], (max_seq, H)))
    return graph_params, text_params, text_tables


def prepare_graph_params(gp, num_node_features):
    """Pad channel AND feature dims to 128-lane multiples; cast MXU weights bf16."""
    C = gp['w1'].shape[1]
    nhid = gp['wh1'].shape[1]
    nout = gp['wh2'].shape[1]
    f_pad = _round_up(num_node_features, _LANE)
    Cp = _round_up(C, _LANE)
    nhid_p = _round_up(nhid, _LANE)
    nout_p = _round_up(nout, _LANE)

    def pw(wm, rows, cols):
        return _pad2(wm, rows, cols).astype(jnp.bfloat16)

    def pb(b, cols):                       # biases stay f32 (VPU math)
        return _pad2(b.reshape(1, -1), 1, cols).astype(jnp.float32)

    return dict(
        w1=pw(gp['w1'], f_pad, Cp),             b1=pb(gp['b1'], Cp),
        w2=pw(gp['w2'], Cp, Cp),                b2=pb(gp['b2'], Cp),
        w3=pw(gp['w3'], Cp, Cp),                b3=pb(gp['b3'], Cp),
        wh1=pw(gp['wh1'], Cp, nhid_p),          bh1=pb(gp['bh1'], nhid_p),
        wh2=pw(gp['wh2'], nhid_p, nout_p),      bh2=pb(gp['bh2'], nout_p),
    )


if __name__ == "__main__":
    NUM_NODE_FEATURES = 8
    NOUT = 16
    NHID = 32
    GRAPH_HIDDEN = 32
    HIDDEN = 128          # synthetic BERT hidden (lane-friendly)
    FFN = 256
    VOCAB = 64
    NUM_NODES = 16        # 2 graphs x 8 nodes
    NUM_GRAPHS = 2
    BATCH = 2
    SEQ = 8

    key = jax.random.PRNGKey(0)
    k_par, k_x, k_ids = jax.random.split(key, 3)

    graph_params, text_params, text_tables = _init_params(
        k_par, NUM_NODE_FEATURES, NOUT, NHID, GRAPH_HIDDEN,
        HIDDEN, FFN, VOCAB, SEQ)
    graph_params_prepared = prepare_graph_params(graph_params,
                                                 NUM_NODE_FEATURES)

    # graph batch: node features, ring edges inside each graph, batch vector
    x_nodes = jax.random.normal(k_x, (NUM_NODES, NUM_NODE_FEATURES),
                                dtype=jnp.float32)
    src, dst = [], []
    for g in range(NUM_GRAPHS):
        base = g * 8
        for i in range(8):
            src.append(base + i)
            dst.append(base + (i + 1) % 8)
    edge_index = jnp.array([src, dst], dtype=jnp.int32)          # [2, 16]
    batch_vec = jnp.repeat(jnp.arange(NUM_GRAPHS, dtype=jnp.int32), 8)

    # text inputs
    input_ids = jax.random.randint(k_ids, (BATCH, SEQ), 0, VOCAB,
                                   dtype=jnp.int32)
    attention_mask = jnp.array([[1] * SEQ, [1] * (SEQ - 2) + [0] * 2],
                               dtype=jnp.int32)

    # main forward (uses the fully-fused single-launch graph kernel)
    graph_out, text_out = model_baseline_forward(
        (x_nodes, edge_index, batch_vec), input_ids, attention_mask,
        graph_params_prepared, text_params, text_tables, NUM_GRAPHS, NOUT)
    jax.block_until_ready((graph_out, text_out))

    # cross-check: force the large-graph tiled path (2x2 grid) on the same data
    graph_out_tiled = graph_encoder_forward(
        x_nodes, edge_index, batch_vec, NUM_GRAPHS, graph_params_prepared,
        NOUT, force_tiled=True, tile=128, min_pad=256)
    jax.block_until_ready(graph_out_tiled)

    assert graph_out.shape == (NUM_GRAPHS, NOUT)
    assert text_out.shape == (BATCH, HIDDEN)
    assert jnp.all(jnp.isfinite(graph_out)) and jnp.all(jnp.isfinite(text_out))
    assert jnp.allclose(graph_out, graph_out_tiled, rtol=2e-2, atol=2e-2), (
        "fused vs tiled graph-encoder mismatch")
    print("KERNEL_OK")
</pallas_src>

<mosaic_0001>
module attributes {stable_mosaic.version = 11 : i64} {
  func.func @fused_graph_kernel(%arg0: memref<128x128xi8, #tpu.memory_space<vmem>>, %arg1: memref<128x1xf32, #tpu.memory_space<vmem>>, %arg2: memref<128x128xbf16, #tpu.memory_space<vmem>>, %arg3: memref<8x128xbf16, #tpu.memory_space<vmem>>, %arg4: memref<128x128xbf16, #tpu.memory_space<vmem>>, %arg5: memref<1x128xf32, #tpu.memory_space<vmem>>, %arg6: memref<128x128xbf16, #tpu.memory_space<vmem>>, %arg7: memref<1x128xf32, #tpu.memory_space<vmem>>, %arg8: memref<128x128xbf16, #tpu.memory_space<vmem>>, %arg9: memref<1x128xf32, #tpu.memory_space<vmem>>, %arg10: memref<128x128xbf16, #tpu.memory_space<vmem>>, %arg11: memref<1x128xf32, #tpu.memory_space<vmem>>, %arg12: memref<128x128xbf16, #tpu.memory_space<vmem>>, %arg13: memref<1x128xf32, #tpu.memory_space<vmem>>, %arg14: memref<8x128xf32, #tpu.memory_space<vmem>>) attributes {dimension_semantics = [], scalar_prefetch = 0 : i64, scratch_operands = 0 : i64, tpu.core_type = #tpu.core_type<tc>} {
    %c0 = arith.constant 0 : index
    %c0_0 = arith.constant 0 : index
    %0 = vector.load %arg0[%c0, %c0_0] : memref<128x128xi8, #tpu.memory_space<vmem>>, vector<128x128xi8>
    %1 = arith.sitofp %0 : vector<128x128xi8> to vector<128x128xf32>
    %2 = arith.truncf %1 : vector<128x128xf32> to vector<128x128xbf16>
    %c0_1 = arith.constant 0 : index
    %c0_2 = arith.constant 0 : index
    %3 = vector.load %arg1[%c0_1, %c0_2] : memref<128x1xf32, #tpu.memory_space<vmem>>, vector<128x1xf32>
    %c0_3 = arith.constant 0 : index
    %c0_4 = arith.constant 0 : index
    %4 = vector.load %arg2[%c0_3, %c0_4] : memref<128x128xbf16, #tpu.memory_space<vmem>>, vector<128x128xbf16>
    %c0_5 = arith.constant 0 : index
    %c0_6 = arith.constant 0 : index
    %5 = vector.load %arg4[%c0_5, %c0_6] : memref<128x128xbf16, #tpu.memory_space<vmem>>, vector<128x128xbf16>
    %cst = arith.constant dense<0.000000e+00> : vector<128x128xf32>
    %6 = tpu.matmul %4, %5, %cst {dimension_numbers = #tpu.dot_dimension_numbers<[1], [0], [0], [1], [0, 0, 1, 1], [], []>} : vector<128x128xbf16>, vector<128x128xbf16>, vector<128x128xf32> -> vector<128x128xf32>
    %7 = vector.broadcast %3 : vector<128x1xf32> to vector<128x128xf32>
    %8 = arith.mulf %7, %6 : vector<128x128xf32>
    %9 = arith.truncf %8 : vector<128x128xf32> to vector<128x128xbf16>
    %cst_7 = arith.constant dense<0.000000e+00> : vector<128x128xf32>
    %10 = tpu.matmul %2, %9, %cst_7 {dimension_numbers = #tpu.dot_dimension_numbers<[1], [0], [0], [1], [0, 0, 1, 1], [], []>} : vector<128x128xbf16>, vector<128x128xbf16>, vector<128x128xf32> -> vector<128x128xf32>
    %11 = vector.broadcast %3 : vector<128x1xf32> to vector<128x128xf32>
    %12 = arith.mulf %11, %10 : vector<128x128xf32>
    %c0_8 = arith.constant 0 : index
    %c0_9 = arith.constant 0 : index
    %13 = vector.load %arg5[%c0_8, %c0_9] : memref<1x128xf32, #tpu.memory_space<vmem>>, vector<1x128xf32>
    %14 = vector.broadcast %13 : vector<1x128xf32> to vector<128x128xf32>
    %15 = arith.addf %12, %14 : vector<128x128xf32>
    %cst_10 = arith.constant 0.000000e+00 : f32
    %16 = vector.broadcast %cst_10 : f32 to vector<128x128xf32>
    %17 = arith.maximumf %15, %16 : vector<128x128xf32>
    %18 = arith.truncf %17 : vector<128x128xf32> to vector<128x128xbf16>
    %c0_11 = arith.constant 0 : index
    %c0_12 = arith.constant 0 : index
    %19 = vector.load %arg6[%c0_11, %c0_12] : memref<128x128xbf16, #tpu.memory_space<vmem>>, vector<128x128xbf16>
    %cst_13 = arith.constant dense<0.000000e+00> : vector<128x128xf32>
    %20 = tpu.matmul %18, %19, %cst_13 {dimension_numbers = #tpu.dot_dimension_numbers<[1], [0], [0], [1], [0, 0, 1, 1], [], []>} : vector<128x128xbf16>, vector<128x128xbf16>, vector<128x128xf32> -> vector<128x128xf32>
    %21 = vector.broadcast %3 : vector<128x1xf32> to vector<128x128xf32>
    %22 = arith.mulf %21, %20 : vector<128x128xf32>
    %23 = arith.truncf %22 : vector<128x128xf32> to vector<128x128xbf16>
    %cst_14 = arith.constant dense<0.000000e+00> : vector<128x128xf32>
    %24 = tpu.matmul %2, %23, %cst_14 {dimension_numbers = #tpu.dot_dimension_numbers<[1], [0], [0], [1], [0, 0, 1, 1], [], []>} : vector<128x128xbf16>, vector<128x128xbf16>, vector<128x128xf32> -> vector<128x128xf32>
    %25 = vector.broadcast %3 : vector<128x1xf32> to vector<128x128xf32>
    %26 = arith.mulf %25, %24 : vector<128x128xf32>
    %c0_15 = arith.constant 0 : index
    %c0_16 = arith.constant 0 : index
    %27 = vector.load %arg7[%c0_15, %c0_16] : memref<1x128xf32, #tpu.memory_space<vmem>>, vector<1x128xf32>
    %28 = vector.broadcast %27 : vector<1x128xf32> to vector<128x128xf32>
    %29 = arith.addf %26, %28 : vector<128x128xf32>
    %cst_17 = arith.constant 0.000000e+00 : f32
    %30 = vector.broadcast %cst_17 : f32 to vector<128x128xf32>
    %31 = arith.maximumf %29, %30 : vector<128x128xf32>
    %32 = arith.truncf %31 : vector<128x128xf32> to vector<128x128xbf16>
    %c0_18 = arith.constant 0 : index
    %c0_19 = arith.constant 0 : index
    %33 = vector.load %arg8[%c0_18, %c0_19] : memref<128x128xbf16, #tpu.memory_space<vmem>>, vector<128x128xbf16>
    %cst_20 = arith.constant dense<0.000000e+00> : vector<128x128xf32>
    %34 = tpu.matmul %32, %33, %cst_20 {dimension_numbers = #tpu.dot_dimension_numbers<[1], [0], [0], [1], [0, 0, 1, 1], [], []>} : vector<128x128xbf16>, vector<128x128xbf16>, vector<128x128xf32> -> vector<128x128xf32>
    %35 = vector.broadcast %3 : vector<128x1xf32> to vector<128x128xf32>
    %36 = arith.mulf %35, %34 : vector<128x128xf32>
    %37 = arith.truncf %36 : vector<128x128xf32> to vector<128x128xbf16>
    %cst_21 = arith.constant dense<0.000000e+00> : vector<128x128xf32>
    %38 = tpu.matmul %2, %37, %cst_21 {dimension_numbers = #tpu.dot_dimension_numbers<[1], [0], [0], [1], [0, 0, 1, 1], [], []>} : vector<128x128xbf16>, vector<128x128xbf16>, vector<128x128xf32> -> vector<128x128xf32>
    %39 = vector.broadcast %3 : vector<128x1xf32> to vector<128x128xf32>
    %40 = arith.mulf %39, %38 : vector<128x128xf32>
    %c0_22 = arith.constant 0 : index
    %c0_23 = arith.constant 0 : index
    %41 = vector.load %arg9[%c0_22, %c0_23] : memref<1x128xf32, #tpu.memory_space<vmem>>, vector<1x128xf32>
    %42 = vector.broadcast %41 : vector<1x128xf32> to vector<128x128xf32>
    %43 = arith.addf %40, %42 : vector<128x128xf32>
    %44 = arith.truncf %43 : vector<128x128xf32> to vector<128x128xbf16>
    %c0_24 = arith.constant 0 : index
    %c0_25 = arith.constant 0 : index
    %45 = vector.load %arg3[%c0_24, %c0_25] : memref<8x128xbf16, #tpu.memory_space<vmem>>, vector<8x128xbf16>
    %cst_26 = arith.constant dense<0.000000e+00> : vector<8x128xf32>
    %46 = tpu.matmul %45, %44, %cst_26 {dimension_numbers = #tpu.dot_dimension_numbers<[1], [0], [0], [1], [0, 0, 1, 1], [], []>} : vector<8x128xbf16>, vector<128x128xbf16>, vector<8x128xf32> -> vector<8x128xf32>
    %47 = arith.truncf %46 : vector<8x128xf32> to vector<8x128xbf16>
    %c0_27 = arith.constant 0 : index
    %c0_28 = arith.constant 0 : index
    %48 = vector.load %arg10[%c0_27, %c0_28] : memref<128x128xbf16, #tpu.memory_space<vmem>>, vector<128x128xbf16>
    %cst_29 = arith.constant dense<0.000000e+00> : vector<8x128xf32>
    %49 = tpu.matmul %47, %48, %cst_29 {dimension_numbers = #tpu.dot_dimension_numbers<[1], [0], [0], [1], [0, 0, 1, 1], [], []>} : vector<8x128xbf16>, vector<128x128xbf16>, vector<8x128xf32> -> vector<8x128xf32>
    %c0_30 = arith.constant 0 : index
    %c0_31 = arith.constant 0 : index
    %50 = vector.load %arg11[%c0_30, %c0_31] : memref<1x128xf32, #tpu.memory_space<vmem>>, vector<1x128xf32>
    %51 = vector.broadcast %50 : vector<1x128xf32> to vector<8x128xf32>
    %52 = arith.addf %49, %51 : vector<8x128xf32>
    %cst_32 = arith.constant 0.000000e+00 : f32
    %53 = vector.broadcast %cst_32 : f32 to vector<8x128xf32>
    %54 = arith.maximumf %52, %53 : vector<8x128xf32>
    %55 = arith.truncf %54 : vector<8x128xf32> to vector<8x128xbf16>
    %c0_33 = arith.constant 0 : index
    %c0_34 = arith.constant 0 : index
    %56 = vector.load %arg12[%c0_33, %c0_34] : memref<128x128xbf16, #tpu.memory_space<vmem>>, vector<128x128xbf16>
    %cst_35 = arith.constant dense<0.000000e+00> : vector<8x128xf32>
    %57 = tpu.matmul %55, %56, %cst_35 {dimension_numbers = #tpu.dot_dimension_numbers<[1], [0], [0], [1], [0, 0, 1, 1], [], []>} : vector<8x128xbf16>, vector<128x128xbf16>, vector<8x128xf32> -> vector<8x128xf32>
    %c0_36 = arith.constant 0 : index
    %c0_37 = arith.constant 0 : index
    %58 = vector.load %arg13[%c0_36, %c0_37] : memref<1x128xf32, #tpu.memory_space<vmem>>, vector<1x128xf32>
    %59 = vector.broadcast %58 : vector<1x128xf32> to vector<8x128xf32>
    %60 = arith.addf %57, %59 : vector<8x128xf32>
    %c0_38 = arith.constant 0 : index
    %c0_39 = arith.constant 0 : index
    %61 = vector.load %arg14[%c0_38, %c0_39] : memref<8x128xf32, #tpu.memory_space<vmem>>, vector<8x128xf32>
    tpu.vector_store %arg14[%c0_38, %c0_39], %60 {strides = array<i32>} : memref<8x128xf32, #tpu.memory_space<vmem>>, vector<8x128xf32>,
    return
  }
}

</mosaic_0001>

<llo_original>
// kernel: tpu_custom_call.1
$region0: #{tpu_custom_call.1}
  #allocation0 [shape = 'u32[]', space=smem, size = 0x4, offset = 0x4, fixed_abs, tag = 'smem constant byte address 0x4 - core index']
  #allocation1 [shape = 'u32[72,128]{1,0:T(1,128)}', space=vmem, size = 0x9000, scoped, tag = 'internal scratch']
  %s0 = inlined_call_operand.hbm [shape: s8[128,128], index: 0, kind: input, shape index: {}]
  %s1 = inlined_call_operand.vmem [shape: f32[128,1], index: 1, kind: input, shape index: {}]
  %s2 = inlined_call_operand.vmem [shape: bf16[128,128], index: 2, kind: input, shape index: {}]
  %s3 = inlined_call_operand.hbm [shape: bf16[8,128], index: 3, kind: input, shape index: {}]
  %s4 = inlined_call_operand.vmem [shape: bf16[128,128], index: 4, kind: input, shape index: {}]
  %s5 = inlined_call_operand.vmem [shape: f32[1,128], index: 5, kind: input, shape index: {}]
  %s6 = inlined_call_operand.hbm [shape: bf16[128,128], index: 6, kind: input, shape index: {}]
  %s7 = inlined_call_operand.vmem [shape: f32[1,128], index: 7, kind: input, shape index: {}]
  %s8 = inlined_call_operand.hbm [shape: bf16[128,128], index: 8, kind: input, shape index: {}]
  %s9 = inlined_call_operand.vmem [shape: f32[1,128], index: 9, kind: input, shape index: {}]
  %s10 = inlined_call_operand.hbm [shape: bf16[128,128], index: 10, kind: input, shape index: {}]
  %s11 = inlined_call_operand.vmem [shape: f32[1,128], index: 11, kind: input, shape index: {}]
  %s12 = inlined_call_operand.hbm [shape: bf16[128,128], index: 12, kind: input, shape index: {}]
  %s13 = inlined_call_operand.vmem [shape: f32[1,128], index: 13, kind: input, shape index: {}]
  %s14 = inlined_call_operand.hbm [shape: f32[8,128], index: 14, kind: output, shape index: {}]
  %s15 = sld [smem:[#allocation0]]
  $region90: #{tpu_custom_call.1} parent=0
    _
  %s17 = ssub.s32 1, %s15
  %s18 = scalar_select 0, %s17, %s15
  $region1: #{tpu_custom_call.1} parent=0
    #allocation2 [shape = 'u8[16384]{0}', space=vmem, size = 0x4000, scoped, tag = 'input window, operand 0, single buffered']
    #allocation3 [shape = 's32[1]{0}', space=sflag, size = 0x4, scoped, tag = 'scoped memory for tpu_custom_call.1']
    #allocation4 [shape = 's32[1]{0}', space=sflag, size = 0x4, scoped, tag = 'scoped memory for tpu_custom_call.1']
    #allocation5 [shape = 'u8[2048]{0}', space=vmem, size = 0x800, scoped, tag = 'input window, operand 3, single buffered']
    #allocation6 [shape = 's32[1]{0}', space=sflag, size = 0x4, scoped, tag = 'scoped memory for tpu_custom_call.1']
    #allocation7 [shape = 'u8[32768]{0}', space=vmem, size = 0x8000, scoped, tag = 'input window, operand 6, single buffered']
    #allocation8 [shape = 'u8[32768]{0}', space=vmem, size = 0x8000, scoped, tag = 'input window, operand 8, single buffered']
    #allocation9 [shape = 's32[1]{0}', space=sflag, size = 0x4, scoped, tag = 'scoped memory for tpu_custom_call.1']
    #allocation10 [shape = 'u8[32768]{0}', space=vmem, size = 0x8000, scoped, tag = 'input window, operand 10, single buffered']
    #allocation11 [shape = 'u8[32768]{0}', space=vmem, size = 0x8000, scoped, tag = 'input window, operand 12, single buffered']
    #allocation12 [shape = 's32[1]{0}', space=sflag, size = 0x4, scoped, tag = 'scoped memory for tpu_custom_call.1']
    #allocation13 [shape = 'u8[4096]{0}', space=vmem, size = 0x1000, scoped, tag = 'output window, operand 0, single buffered']
    %19 = vsyncpa [#allocation3], 0
    %20 = vsyncpa [#allocation6], 0
    %21 = vsyncpa [#allocation9], 0
    %22 = vsyncpa [#allocation12], 0
    %23 = vsyncpa [#allocation4], 0
    // Predicated region
    $region2: #{tpu_custom_call.1} parent=1 // pred_check
      _
    $region3: #{tpu_custom_call.1} parent=1 // pred_check_branch
      %25 = sbr.rel (0) target = $region5
    $region4: #{tpu_custom_call.1} parent=1 // pred_region
      %27 = vsyncadd [#allocation3], 0
      %s28 = sshll.u32 %s0, 4
      %s29 = int_to_ptr.hbm [resolvable:$true] %s28
      %s30 = sshll.u32 [#allocation2], 4
      %s31 = int_to_ptr.vmem [resolvable:$true] %s30
      %36 = dma.hbm_to_vmem [thread:$0]  %s29, 512, %s31, [#allocation3], 128, 128, 8
    $region5: #{tpu_custom_call.1} parent=1 // pred_fallthru
      _
    // Predicated region
    $region6: #{tpu_custom_call.1} parent=1 // pred_check
      _
    $region7: #{tpu_custom_call.1} parent=1 // pred_check_branch
      %38 = sbr.rel (0) target = $region9
    $region8: #{tpu_custom_call.1} parent=1 // pred_region
      _
    $region9: #{tpu_custom_call.1} parent=1 // pred_fallthru
      _
    // Predicated region
    $region10: #{tpu_custom_call.1} parent=1 // pred_check
      _
    $region11: #{tpu_custom_call.1} parent=1 // pred_check_branch
      %40 = sbr.rel (0) target = $region13
    $region12: #{tpu_custom_call.1} parent=1 // pred_region
      _
    $region13: #{tpu_custom_call.1} parent=1 // pred_fallthru
      _
    // Predicated region
    $region14: #{tpu_custom_call.1} parent=1 // pred_check
      _
    $region15: #{tpu_custom_call.1} parent=1 // pred_check_branch
      %42 = sbr.rel (0) target = $region17
    $region16: #{tpu_custom_call.1} parent=1 // pred_region
      %44 = vsyncadd [#allocation6], 0
      %s46 = sshll.u32 %s3, 4
      %s47 = int_to_ptr.hbm [resolvable:$true] %s46
      %s48 = sshll.u32 [#allocation5], 4
      %s49 = int_to_ptr.vmem [resolvable:$true] %s48
      %51 = dma.hbm_to_vmem [thread:$0]  %s47, 64, %s49, [#allocation6]
    $region17: #{tpu_custom_call.1} parent=1 // pred_fallthru
      _
    // Predicated region
    $region18: #{tpu_custom_call.1} parent=1 // pred_check
      _
    $region19: #{tpu_custom_call.1} parent=1 // pred_check_branch
      %53 = sbr.rel (0) target = $region21
    $region20: #{tpu_custom_call.1} parent=1 // pred_region
      _
    $region21: #{tpu_custom_call.1} parent=1 // pred_fallthru
      _
    // Predicated region
    $region22: #{tpu_custom_call.1} parent=1 // pred_check
      _
    $region23: #{tpu_custom_call.1} parent=1 // pred_check_branch
      %55 = sbr.rel (0) target = $region25
    $region24: #{tpu_custom_call.1} parent=1 // pred_region
      _
    $region25: #{tpu_custom_call.1} parent=1 // pred_fallthru
      _
    // Predicated region
    $region26: #{tpu_custom_call.1} parent=1 // pred_check
      _
    $region27: #{tpu_custom_call.1} parent=1 // pred_check_branch
      %57 = sbr.rel (0) target = $region29
    $region28: #{tpu_custom_call.1} parent=1 // pred_region
      %59 = vsyncadd [#allocation6], 0
      %s60 = sshll.u32 %s6, 4
      %s61 = int_to_ptr.hbm [resolvable:$true] %s60
      %s62 = sshll.u32 [#allocation7], 4
      %s63 = int_to_ptr.vmem [resolvable:$true] %s62
      %68 = dma.hbm_to_vmem [thread:$0]  %s61, 1024, %s63, [#allocation6], 64, 64, 4
    $region29: #{tpu_custom_call.1} parent=1 // pred_fallthru
      _
    // Predicated region
    $region30: #{tpu_custom_call.1} parent=1 // pred_check
      _
    $region31: #{tpu_custom_call.1} parent=1 // pred_check_branch
      %70 = sbr.rel (0) target = $region33
    $region32: #{tpu_custom_call.1} parent=1 // pred_region
      _
    $region33: #{tpu_custom_call.1} parent=1 // pred_fallthru
      _
    // Predicated region
    $region34: #{tpu_custom_call.1} parent=1 // pred_check
      _
    $region35: #{tpu_custom_call.1} parent=1 // pred_check_branch
      %72 = sbr.rel (0) target = $region37
    $region36: #{tpu_custom_call.1} parent=1 // pred_region
      %74 = vsyncadd [#allocation9], 0
      %s75 = sshll.u32 %s8, 4
      %s76 = int_to_ptr.hbm [resolvable:$true] %s75
      %s77 = sshll.u32 [#allocation8], 4
      %s78 = int_to_ptr.vmem [resolvable:$true] %s77
      %83 = dma.hbm_to_vmem [thread:$0]  %s76, 1024, %s78, [#allocation9], 64, 64, 4
    $region37: #{tpu_custom_call.1} parent=1 // pred_fallthru
      _
    // Predicated region
    $region38: #{tpu_custom_call.1} parent=1 // pred_check
      _
    $region39: #{tpu_custom_call.1} parent=1 // pred_check_branch
      %85 = sbr.rel (0) target = $region41
    $region40: #{tpu_custom_call.1} parent=1 // pred_region
      _
    $region41: #{tpu_custom_call.1} parent=1 // pred_fallthru
      _
    // Predicated region
    $region42: #{tpu_custom_call.1} parent=1 // pred_check
      _
    $region43: #{tpu_custom_call.1} parent=1 // pred_check_branch
      %87 = sbr.rel (0) target = $region45
    $region44: #{tpu_custom_call.1} parent=1 // pred_region
      %89 = vsyncadd [#allocation9], 0
      %s90 = sshll.u32 %s10, 4
      %s91 = int_to_ptr.hbm [resolvable:$true] %s90
      %s92 = sshll.u32 [#allocation10], 4
      %s93 = int_to_ptr.vmem [resolvable:$true] %s92
      %98 = dma.hbm_to_vmem [thread:$0]  %s91, 1024, %s93, [#allocation9], 64, 64, 4
    $region45: #{tpu_custom_call.1} parent=1 // pred_fallthru
      _
    // Predicated region
    $region46: #{tpu_custom_call.1} parent=1 // pred_check
      _
    $region47: #{tpu_custom_call.1} parent=1 // pred_check_branch
      %100 = sbr.rel (0) target = $region49
    $region48: #{tpu_custom_call.1} parent=1 // pred_region
      _
    $region49: #{tpu_custom_call.1} parent=1 // pred_fallthru
      _
    // Predicated region
    $region50: #{tpu_custom_call.1} parent=1 // pred_check
      _
    $region51: #{tpu_custom_call.1} parent=1 // pred_check_branch
      %102 = sbr.rel (0) target = $region53
    $region52: #{tpu_custom_call.1} parent=1 // pred_region
      %104 = vsyncadd [#allocation12], 0
      %s105 = sshll.u32 %s12, 4
      %s106 = int_to_ptr.hbm [resolvable:$true] %s105
      %s107 = sshll.u32 [#allocation11], 4
      %s108 = int_to_ptr.vmem [resolvable:$true] %s107
      %113 = dma.hbm_to_vmem [thread:$0]  %s106, 1024, %s108, [#allocation12], 64, 64, 4
    $region53: #{tpu_custom_call.1} parent=1 // pred_fallthru
      _
    // Predicated region
    $region54: #{tpu_custom_call.1} parent=1 // pred_check
      _
    $region55: #{tpu_custom_call.1} parent=1 // pred_check_branch
      %115 = sbr.rel (0) target = $region57
    $region56: #{tpu_custom_call.1} parent=1 // pred_region
      _
    $region57: #{tpu_custom_call.1} parent=1 // pred_fallthru
      _
    // Predicated region
    $region58: #{tpu_custom_call.1} parent=1 // pred_check
      _
    $region59: #{tpu_custom_call.1} parent=1 // pred_check_branch
      %117 = sbr.rel (0) target = $region61
    $region60: #{tpu_custom_call.1} parent=1 // pred_region
      %119 = dma.done [#allocation3], 512
    $region61: #{tpu_custom_call.1} parent=1 // pred_fallthru
      _
    // Predicated region
    $region62: #{tpu_custom_call.1} parent=1 // pred_check
      _
    $region63: #{tpu_custom_call.1} parent=1 // pred_check_branch
      %121 = sbr.rel (0) target = $region65
    $region64: #{tpu_custom_call.1} parent=1 // pred_region
      %123 = dma.done [#allocation6], 64
    $region65: #{tpu_custom_call.1} parent=1 // pred_fallthru
      _
    // Predicated region
    $region66: #{tpu_custom_call.1} parent=1 // pred_check
      _
    $region67: #{tpu_custom_call.1} parent=1 // pred_check_branch
      %125 = sbr.rel (0) target = $region69
    $region68: #{tpu_custom_call.1} parent=1 // pred_region
      %127 = dma.done [#allocation6], 1024
    $region69: #{tpu_custom_call.1} parent=1 // pred_fallthru
      _
    // Predicated region
    $region70: #{tpu_custom_call.1} parent=1 // pred_check
      _
    $region71: #{tpu_custom_call.1} parent=1 // pred_check_branch
      %129 = sbr.rel (0) target = $region73
    $region72: #{tpu_custom_call.1} parent=1 // pred_region
      %131 = dma.done [#allocation9], 1024
    $region73: #{tpu_custom_call.1} parent=1 // pred_fallthru
      _
    // Predicated region
    $region74: #{tpu_custom_call.1} parent=1 // pred_check
      _
    $region75: #{tpu_custom_call.1} parent=1 // pred_check_branch
      %133 = sbr.rel (0) target = $region77
    $region76: #{tpu_custom_call.1} parent=1 // pred_region
      %135 = dma.done [#allocation9], 1024
    $region77: #{tpu_custom_call.1} parent=1 // pred_fallthru
      _
    // Predicated region
    $region78: #{tpu_custom_call.1} parent=1 // pred_check
      _
    $region79: #{tpu_custom_call.1} parent=1 // pred_check_branch
      %137 = sbr.rel (0) target = $region81
    $region80: #{tpu_custom_call.1} parent=1 // pred_region
      %139 = dma.done [#allocation12], 1024
    $region81: #{tpu_custom_call.1} parent=1 // pred_fallthru
      _
    %v140 = vld [vmem:[#allocation2] sm:$0xff]
    %v141 = vld [vmem:[#allocation2 + $0x8] sm:$0xff]
    %v142 = vld [vmem:[#allocation2 + $0x10] sm:$0xff]
    %v143 = vld [vmem:[#allocation2 + $0x18] sm:$0xff]
    %v144 = vunpack.c.0.s8 %v140
    %v145 = vunpack.c.1.s8 %v140
    %v146 = vunpack.c.2.s8 %v140
    %v147 = vunpack.c.3.s8 %v140
    %v148 = vunpack.c.0.s8 %v141
    %v149 = vunpack.c.1.s8 %v141
    %v150 = vunpack.c.2.s8 %v141
    %v151 = vunpack.c.3.s8 %v141
    %v152 = vunpack.c.0.s8 %v142
    %v153 = vunpack.c.1.s8 %v142
    %v154 = vunpack.c.2.s8 %v142
    %v155 = vunpack.c.3.s8 %v142
    %v156 = vunpack.c.0.s8 %v143
    %v157 = vunpack.c.1.s8 %v143
    %v158 = vunpack.c.2.s8 %v143
    %v159 = vunpack.c.3.s8 %v143
    %v160 = vcvt.s32.f32 %v144
    %v161 = vcvt.s32.f32 %v145
    %v162 = vcvt.s32.f32 %v146
    %v163 = vcvt.s32.f32 %v147
    %v164 = vcvt.s32.f32 %v148
    %v165 = vcvt.s32.f32 %v149
    %v166 = vcvt.s32.f32 %v150
    %v167 = vcvt.s32.f32 %v151
    %v168 = vcvt.s32.f32 %v152
    %v169 = vcvt.s32.f32 %v153
    %v170 = vcvt.s32.f32 %v154
    %v171 = vcvt.s32.f32 %v155
    %v172 = vcvt.s32.f32 %v156
    %v173 = vcvt.s32.f32 %v157
    %v174 = vcvt.s32.f32 %v158
    %v175 = vcvt.s32.f32 %v159
    %v176 = vpack.c.bf16 %v161, %v160
    %v177 = vpack.c.bf16 %v163, %v162
    %v178 = vpack.c.bf16 %v165, %v164
    %v179 = vpack.c.bf16 %v167, %v166
    %v180 = vpack.c.bf16 %v169, %v168
    %v181 = vpack.c.bf16 %v171, %v170
    %v182 = vpack.c.bf16 %v173, %v172
    %v183 = vpack.c.bf16 %v175, %v174
    %v184 = vld [vmem:[%s1] sm:$0xff]
    %v185 = vld [vmem:[%s1 + $0x8] sm:$0xff]
    %v186 = vld [vmem:[%s1 + $0x10] sm:$0xff]
    %v187 = vld [vmem:[%s1 + $0x18] sm:$0xff]
    %v188 = vld [vmem:[%s1 + $0x20] sm:$0xff]
    %v189 = vld [vmem:[%s1 + $0x28] sm:$0xff]
    %v190 = vld [vmem:[%s1 + $0x30] sm:$0xff]
    %v191 = vld [vmem:[%s1 + $0x38] sm:$0xff]
    %v192 = vld [vmem:[%s1 + $0x40] sm:$0xff]
    %v193 = vld [vmem:[%s1 + $0x48] sm:$0xff]
    %v194 = vld [vmem:[%s1 + $0x50] sm:$0xff]
    %v195 = vld [vmem:[%s1 + $0x58] sm:$0xff]
    %v196 = vld [vmem:[%s1 + $0x60] sm:$0xff]
    %v197 = vld [vmem:[%s1 + $0x68] sm:$0xff]
    %v198 = vld [vmem:[%s1 + $0x70] sm:$0xff]
    %v199 = vld [vmem:[%s1 + $0x78] sm:$0xff]
    %v200 = vld [vmem:[%s2] sm:$0xf]
    %v201 = vld [vmem:[%s2 + $0x4] sm:$0xf]
    %v202 = vld [vmem:[%s2 + $0x8] sm:$0xf]
    %v203 = vld [vmem:[%s2 + $0xc] sm:$0xf]
    %v204 = vld [vmem:[%s2 + $0x10] sm:$0xf]
    %v205 = vld [vmem:[%s2 + $0x14] sm:$0xf]
    %v206 = vld [vmem:[%s2 + $0x18] sm:$0xf]
    %v207 = vld [vmem:[%s2 + $0x1c] sm:$0xf]
    %v208 = vld [vmem:[%s2 + $0x20] sm:$0xf]
    %v209 = vld [vmem:[%s2 + $0x24] sm:$0xf]
    %v210 = vld [vmem:[%s2 + $0x28] sm:$0xf]
    %v211 = vld [vmem:[%s2 + $0x2c] sm:$0xf]
    %v212 = vld [vmem:[%s2 + $0x30] sm:$0xf]
    %v213 = vld [vmem:[%s2 + $0x34] sm:$0xf]
    %v214 = vld [vmem:[%s2 + $0x38] sm:$0xf]
    %v215 = vld [vmem:[%s2 + $0x3c] sm:$0xf]
    %v216 = vld [vmem:[%s4] sm:$0xf]
    %v217 = vld [vmem:[%s4 + $0x4] sm:$0xf]
    %v218 = vld [vmem:[%s4 + $0x8] sm:$0xf]
    %v219 = vld [vmem:[%s4 + $0xc] sm:$0xf]
    %v220 = vld [vmem:[%s4 + $0x10] sm:$0xf]
    %v221 = vld [vmem:[%s4 + $0x14] sm:$0xf]
    %v222 = vld [vmem:[%s4 + $0x18] sm:$0xf]
    %v223 = vld [vmem:[%s4 + $0x1c] sm:$0xf]
    %v224 = vld [vmem:[%s4 + $0x20] sm:$0xf]
    %v225 = vld [vmem:[%s4 + $0x24] sm:$0xf]
    %v226 = vld [vmem:[%s4 + $0x28] sm:$0xf]
    %v227 = vld [vmem:[%s4 + $0x2c] sm:$0xf]
    %v228 = vld [vmem:[%s4 + $0x30] sm:$0xf]
    %v229 = vld [vmem:[%s4 + $0x34] sm:$0xf]
    %v230 = vld [vmem:[%s4 + $0x38] sm:$0xf]
    %v231 = vld [vmem:[%s4 + $0x3c] sm:$0xf]
    %v248 = vunpack.c.l.b16 %v200
    %v249 = vunpack.c.l.b16 %v201
    %v250 = vunpack.c.l.b16 %v202
    %v251 = vunpack.c.l.b16 %v203
    %v252 = vunpack.c.l.b16 %v204
    %v253 = vunpack.c.l.b16 %v205
    %v254 = vunpack.c.l.b16 %v206
    %v255 = vunpack.c.l.b16 %v207
    %v256 = vunpack.c.l.b16 %v208
    %v257 = vunpack.c.l.b16 %v209
    %v258 = vunpack.c.l.b16 %v210
    %v259 = vunpack.c.l.b16 %v211
    %v260 = vunpack.c.l.b16 %v212
    %v261 = vunpack.c.l.b16 %v213
    %v262 = vunpack.c.l.b16 %v214
    %v263 = vunpack.c.l.b16 %v215
    %v264 = vpack.c.b16 %v249, %v248
    %v265 = vpack.c.b16 %v251, %v250
    %v266 = vpack.c.b16 %v253, %v252
    %v267 = vpack.c.b16 %v255, %v254
    %v268 = vpack.c.b16 %v257, %v256
    %v269 = vpack.c.b16 %v259, %v258
    %v270 = vpack.c.b16 %v261, %v260
    %v271 = vpack.c.b16 %v263, %v262
    %v296 = vunpack.c.l.b16 %v216
    %v297 = vunpack.c.l.b16 %v217
    %v298 = vunpack.c.l.b16 %v218
    %v299 = vunpack.c.l.b16 %v219
    %v300 = vunpack.c.l.b16 %v220
    %v301 = vunpack.c.l.b16 %v221
    %v302 = vunpack.c.l.b16 %v222
    %v303 = vunpack.c.l.b16 %v223
    %v304 = vunpack.c.l.b16 %v224
    %v305 = vunpack.c.l.b16 %v225
    %v306 = vunpack.c.l.b16 %v226
    %v307 = vunpack.c.l.b16 %v227
    %v308 = vunpack.c.l.b16 %v228
    %v309 = vunpack.c.l.b16 %v229
    %v310 = vunpack.c.l.b16 %v230
    %v311 = vunpack.c.l.b16 %v231
    %v312 = vpack.c.b16 %v297, %v296
    %v313 = vpack.c.b16 %v299, %v298
    %v314 = vpack.c.b16 %v301, %v300
    %v315 = vpack.c.b16 %v303, %v302
    %v316 = vpack.c.b16 %v305, %v304
    %v317 = vpack.c.b16 %v307, %v306
    %v318 = vpack.c.b16 %v309, %v308
    %v319 = vpack.c.b16 %v311, %v310
    %328 = vmatpush.bf16.msra.mxu0 %v319
    %329 = vmatpush.bf16.msra.mxu0 %v318
    %330 = vmatpush.bf16.msra.mxu0 %v317
    %331 = vmatpush.bf16.msra.mxu0 %v316
    %332 = vmatpush.bf16.msra.mxu0 %v315
    %333 = vmatpush.bf16.msra.mxu0 %v314
    %334 = vmatpush.bf16.msra.mxu0 %v313
    %335 = vmatpush.bf16.msra.mxu0 %v312
    %336 = vmatmul.bf16.gmra.mxu0 %v264
    %v337 = vpop.f32.mrf.mxu0
    %v338 = vadd.f32 0.0, %v337
    %v339 = vpop.f32.mrf.mxu0
    %v340 = vadd.f32 0.0, %v339
    %341 = vmatmul.bf16.gmra.mxu0 %v265
    %v342 = vpop.f32.mrf.mxu0
    %v343 = vadd.f32 0.0, %v342
    %v344 = vpop.f32.mrf.mxu0
    %v345 = vadd.f32 0.0, %v344
    %346 = vmatmul.bf16.gmra.mxu0 %v266
    %v347 = vpop.f32.mrf.mxu0
    %v348 = vadd.f32 0.0, %v347
    %v349 = vpop.f32.mrf.mxu0
    %v350 = vadd.f32 0.0, %v349
    %351 = vmatmul.bf16.gmra.mxu0 %v267
    %v352 = vpop.f32.mrf.mxu0
    %v353 = vadd.f32 0.0, %v352
    %v354 = vpop.f32.mrf.mxu0
    %v355 = vadd.f32 0.0, %v354
    %356 = vmatmul.bf16.gmra.mxu0 %v268
    %v357 = vpop.f32.mrf.mxu0
    %v358 = vadd.f32 0.0, %v357
    %v359 = vpop.f32.mrf.mxu0
    %v360 = vadd.f32 0.0, %v359
    %361 = vmatmul.bf16.gmra.mxu0 %v269
    %v362 = vpop.f32.mrf.mxu0
    %v363 = vadd.f32 0.0, %v362
    %v364 = vpop.f32.mrf.mxu0
    %v365 = vadd.f32 0.0, %v364
    %366 = vmatmul.bf16.gmra.mxu0 %v270
    %v367 = vpop.f32.mrf.mxu0
    %v368 = vadd.f32 0.0, %v367
    %v369 = vpop.f32.mrf.mxu0
    %v370 = vadd.f32 0.0, %v369
    %371 = vmatmul.bf16.gmra.mxu0 %v271
    %v372 = vpop.f32.mrf.mxu0
    %v373 = vadd.f32 0.0, %v372
    %v374 = vpop.f32.mrf.mxu0
    %v375 = vadd.f32 0.0, %v374
    %376 = vdwg.mxu0
    %378 = vset.pattern.permute.xlu0 0
    %379 = vperm.xlu0 %378, %v184
    %v380 = vpop.permute.xlu0 %379
    %383 = vset.pattern.permute.xlu0 0
    %384 = vperm.xlu0 %383, %v185
    %v385 = vpop.permute.xlu0 %384
    %388 = vset.pattern.permute.xlu0 0
    %389 = vperm.xlu0 %388, %v186
    %v390 = vpop.permute.xlu0 %389
    %393 = vset.pattern.permute.xlu0 0
    %394 = vperm.xlu0 %393, %v187
    %v395 = vpop.permute.xlu0 %394
    %398 = vset.pattern.permute.xlu0 0
    %399 = vperm.xlu0 %398, %v188
    %v400 = vpop.permute.xlu0 %399
    %403 = vset.pattern.permute.xlu0 0
    %404 = vperm.xlu0 %403, %v189
    %v405 = vpop.permute.xlu0 %404
    %408 = vset.pattern.permute.xlu0 0
    %409 = vperm.xlu0 %408, %v190
    %v410 = vpop.permute.xlu0 %409
    %413 = vset.pattern.permute.xlu0 0
    %414 = vperm.xlu0 %413, %v191
    %v415 = vpop.permute.xlu0 %414
    %418 = vset.pattern.permute.xlu0 0
    %419 = vperm.xlu0 %418, %v192
    %v420 = vpop.permute.xlu0 %419
    %423 = vset.pattern.permute.xlu0 0
    %424 = vperm.xlu0 %423, %v193
    %v425 = vpop.permute.xlu0 %424
    %428 = vset.pattern.permute.xlu0 0
    %429 = vperm.xlu0 %428, %v194
    %v430 = vpop.permute.xlu0 %429
    %433 = vset.pattern.permute.xlu0 0
    %434 = vperm.xlu0 %433, %v195
    %v435 = vpop.permute.xlu0 %434
    %438 = vset.pattern.permute.xlu0 0
    %439 = vperm.xlu0 %438, %v196
    %v440 = vpop.permute.xlu0 %439
    %443 = vset.pattern.permute.xlu0 0
    %444 = vperm.xlu0 %443, %v197
    %v445 = vpop.permute.xlu0 %444
    %448 = vset.pattern.permute.xlu0 0
    %449 = vperm.xlu0 %448, %v198
    %v450 = vpop.permute.xlu0 %449
    %453 = vset.pattern.permute.xlu0 0
    %454 = vperm.xlu0 %453, %v199
    %v455 = vpop.permute.xlu0 %454
    %v457 = vmul.f32 %v380, %v338
    %v458 = vmul.f32 %v385, %v340
    %v459 = vmul.f32 %v390, %v343
    %v460 = vmul.f32 %v395, %v345
    %v461 = vmul.f32 %v400, %v348
    %v462 = vmul.f32 %v405, %v350
    %v463 = vmul.f32 %v410, %v353
    %v464 = vmul.f32 %v415, %v355
    %v465 = vmul.f32 %v420, %v358
    %v466 = vmul.f32 %v425, %v360
    %v467 = vmul.f32 %v430, %v363
    %v468 = vmul.f32 %v435, %v365
    %v469 = vmul.f32 %v440, %v368
    %v470 = vmul.f32 %v445, %v370
    %v471 = vmul.f32 %v450, %v373
    %v472 = vmul.f32 %v455, %v375
    %v473 = vpack.c.bf16 %v458, %v457
    %v474 = vpack.c.bf16 %v460, %v459
    %v475 = vpack.c.bf16 %v462, %v461
    %v476 = vpack.c.bf16 %v464, %v463
    %v477 = vpack.c.bf16 %v466, %v465
    %v478 = vpack.c.bf16 %v468, %v467
    %v479 = vpack.c.bf16 %v470, %v469
    %v480 = vpack.c.bf16 %v472, %v471
    %481 = vmatpush.bf16.msra.mxu0 %v480
    %482 = vmatpush.bf16.msra.mxu0 %v479
    %483 = vmatpush.bf16.msra.mxu0 %v478
    %484 = vmatpush.bf16.msra.mxu0 %v477
    %485 = vmatpush.bf16.msra.mxu0 %v476
    %486 = vmatpush.bf16.msra.mxu0 %v475
    %487 = vmatpush.bf16.msra.mxu0 %v474
    %488 = vmatpush.bf16.msra.mxu0 %v473
    %489 = vmatmul.bf16.gmra.mxu0 %v176
    %v490 = vpop.f32.mrf.mxu0
    %v491 = vadd.f32 0.0, %v490
    %v492 = vpop.f32.mrf.mxu0
    %v493 = vadd.f32 0.0, %v492
    %494 = vmatmul.bf16.gmra.mxu0 %v177
    %v495 = vpop.f32.mrf.mxu0
    %v496 = vadd.f32 0.0, %v495
    %v497 = vpop.f32.mrf.mxu0
    %v498 = vadd.f32 0.0, %v497
    %499 = vmatmul.bf16.gmra.mxu0 %v178
    %v500 = vpop.f32.mrf.mxu0
    %v501 = vadd.f32 0.0, %v500
    %v502 = vpop.f32.mrf.mxu0
    %v503 = vadd.f32 0.0, %v502
    %504 = vmatmul.bf16.gmra.mxu0 %v179
    %v505 = vpop.f32.mrf.mxu0
    %v506 = vadd.f32 0.0, %v505
    %v507 = vpop.f32.mrf.mxu0
    %v508 = vadd.f32 0.0, %v507
    %509 = vmatmul.bf16.gmra.mxu0 %v180
    %v510 = vpop.f32.mrf.mxu0
    %v511 = vadd.f32 0.0, %v510
    %v512 = vpop.f32.mrf.mxu0
    %v513 = vadd.f32 0.0, %v512
    %514 = vmatmul.bf16.gmra.mxu0 %v181
    %v515 = vpop.f32.mrf.mxu0
    %v516 = vadd.f32 0.0, %v515
    %v517 = vpop.f32.mrf.mxu0
    %v518 = vadd.f32 0.0, %v517
    %519 = vmatmul.bf16.gmra.mxu0 %v182
    %v520 = vpop.f32.mrf.mxu0
    %v521 = vadd.f32 0.0, %v520
    %v522 = vpop.f32.mrf.mxu0
    %v523 = vadd.f32 0.0, %v522
    %524 = vmatmul.bf16.gmra.mxu0 %v183
    %v525 = vpop.f32.mrf.mxu0
    %v526 = vadd.f32 0.0, %v525
    %v527 = vpop.f32.mrf.mxu0
    %v528 = vadd.f32 0.0, %v527
    %529 = vdwg.mxu0
    %v530 = vmul.f32 %v380, %v491
    %v531 = vmul.f32 %v385, %v493
    %v532 = vmul.f32 %v390, %v496
    %v533 = vmul.f32 %v395, %v498
    %v534 = vmul.f32 %v400, %v501
    %v535 = vmul.f32 %v405, %v503
    %v536 = vmul.f32 %v410, %v506
    %v537 = vmul.f32 %v415, %v508
    %v538 = vmul.f32 %v420, %v511
    %v539 = vmul.f32 %v425, %v513
    %v540 = vmul.f32 %v430, %v516
    %v541 = vmul.f32 %v435, %v518
    %v542 = vmul.f32 %v440, %v521
    %v543 = vmul.f32 %v445, %v523
    %v544 = vmul.f32 %v450, %v526
    %v545 = vmul.f32 %v455, %v528
    %v546 = vld [vmem:[%s5] sm:$0x1]
    %v548 = vperm.slane %v546, 0
    %v550 = vadd.f32 %v530, %v548
    %v551 = vadd.f32 %v531, %v548
    %v552 = vadd.f32 %v532, %v548
    %v553 = vadd.f32 %v533, %v548
    %v554 = vadd.f32 %v534, %v548
    %v555 = vadd.f32 %v535, %v548
    %v556 = vadd.f32 %v536, %v548
    %v557 = vadd.f32 %v537, %v548
    %v558 = vadd.f32 %v538, %v548
    %v559 = vadd.f32 %v539, %v548
    %v560 = vadd.f32 %v540, %v548
    %v561 = vadd.f32 %v541, %v548
    %v562 = vadd.f32 %v542, %v548
    %v563 = vadd.f32 %v543, %v548
    %v564 = vadd.f32 %v544, %v548
    %v565 = vadd.f32 %v545, %v548
    %v566 = vmax.f32 %v550, 0.0
    %v567 = vmax.f32 %v551, 0.0
    %v568 = vmax.f32 %v552, 0.0
    %v569 = vmax.f32 %v553, 0.0
    %v570 = vmax.f32 %v554, 0.0
    %v571 = vmax.f32 %v555, 0.0
    %v572 = vmax.f32 %v556, 0.0
    %v573 = vmax.f32 %v557, 0.0
    %v574 = vmax.f32 %v558, 0.0
    %v575 = vmax.f32 %v559, 0.0
    %v576 = vmax.f32 %v560, 0.0
    %v577 = vmax.f32 %v561, 0.0
    %v578 = vmax.f32 %v562, 0.0
    %v579 = vmax.f32 %v563, 0.0
    %v580 = vmax.f32 %v564, 0.0
    %v581 = vmax.f32 %v565, 0.0
    %v582 = vpack.c.bf16 %v567, %v566
    %v583 = vpack.c.bf16 %v569, %v568
    %v584 = vpack.c.bf16 %v571, %v570
    %v585 = vpack.c.bf16 %v573, %v572
    %v586 = vpack.c.bf16 %v575, %v574
    %v587 = vpack.c.bf16 %v577, %v576
    %v588 = vpack.c.bf16 %v579, %v578
    %v589 = vpack.c.bf16 %v581, %v580
    %v590 = vld [vmem:[#allocation7] sm:$0xf]
    %v591 = vld [vmem:[#allocation7 + $0x4] sm:$0xf]
    %v592 = vld [vmem:[#allocation7 + $0x8] sm:$0xf]
    %v593 = vld [vmem:[#allocation7 + $0xc] sm:$0xf]
    %v594 = vld [vmem:[#allocation7 + $0x10] sm:$0xf]
    %v595 = vld [vmem:[#allocation7 + $0x14] sm:$0xf]
    %v596 = vld [vmem:[#allocation7 + $0x18] sm:$0xf]
    %v597 = vld [vmem:[#allocation7 + $0x1c] sm:$0xf]
    %v598 = vld [vmem:[#allocation7 + $0x20] sm:$0xf]
    %v599 = vld [vmem:[#allocation7 + $0x24] sm:$0xf]
    %v600 = vld [vmem:[#allocation7 + $0x28] sm:$0xf]
    %v601 = vld [vmem:[#allocation7 + $0x2c] sm:$0xf]
    %v602 = vld [vmem:[#allocation7 + $0x30] sm:$0xf]
    %v603 = vld [vmem:[#allocation7 + $0x34] sm:$0xf]
    %v604 = vld [vmem:[#allocation7 + $0x38] sm:$0xf]
    %v605 = vld [vmem:[#allocation7 + $0x3c] sm:$0xf]
    %v622 = vunpack.c.l.b16 %v590
    %v623 = vunpack.c.l.b16 %v591
    %v624 = vunpack.c.l.b16 %v592
    %v625 = vunpack.c.l.b16 %v593
    %v626 = vunpack.c.l.b16 %v594
    %v627 = vunpack.c.l.b16 %v595
    %v628 = vunpack.c.l.b16 %v596
    %v629 = vunpack.c.l.b16 %v597
    %v630 = vunpack.c.l.b16 %v598
    %v631 = vunpack.c.l.b16 %v599
    %v632 = vunpack.c.l.b16 %v600
    %v633 = vunpack.c.l.b16 %v601
    %v634 = vunpack.c.l.b16 %v602
    %v635 = vunpack.c.l.b16 %v603
    %v636 = vunpack.c.l.b16 %v604
    %v637 = vunpack.c.l.b16 %v605
    %v638 = vpack.c.b16 %v623, %v622
    %v639 = vpack.c.b16 %v625, %v624
    %v640 = vpack.c.b16 %v627, %v626
    %v641 = vpack.c.b16 %v629, %v628
    %v642 = vpack.c.b16 %v631, %v630
    %v643 = vpack.c.b16 %v633, %v632
    %v644 = vpack.c.b16 %v635, %v634
    %v645 = vpack.c.b16 %v637, %v636
    %654 = vmatpush.bf16.msra.mxu0 %v645
    %655 = vmatpush.bf16.msra.mxu0 %v644
    %656 = vmatpush.bf16.msra.mxu0 %v643
    %657 = vmatpush.bf16.msra.mxu0 %v642
    %658 = vmatpush.bf16.msra.mxu0 %v641
    %659 = vmatpush.bf16.msra.mxu0 %v640
    %660 = vmatpush.bf16.msra.mxu0 %v639
    %661 = vmatpush.bf16.msra.mxu0 %v638
    %662 = vmatmul.bf16.gmra.mxu0 %v582
    %v663 = vpop.f32.mrf.mxu0
    %v664 = vadd.f32 0.0, %v663
    %v665 = vpop.f32.mrf.mxu0
    %v666 = vadd.f32 0.0, %v665
    %667 = vmatmul.bf16.gmra.mxu0 %v583
    %v668 = vpop.f32.mrf.mxu0
    %v669 = vadd.f32 0.0, %v668
    %v670 = vpop.f32.mrf.mxu0
    %v671 = vadd.f32 0.0, %v670
    %672 = vmatmul.bf16.gmra.mxu0 %v584
    %v673 = vpop.f32.mrf.mxu0
    %v674 = vadd.f32 0.0, %v673
    %v675 = vpop.f32.mrf.mxu0
    %v676 = vadd.f32 0.0, %v675
    %677 = vmatmul.bf16.gmra.mxu0 %v585
    %v678 = vpop.f32.mrf.mxu0
    %v679 = vadd.f32 0.0, %v678
    %v680 = vpop.f32.mrf.mxu0
    %v681 = vadd.f32 0.0, %v680
    %682 = vmatmul.bf16.gmra.mxu0 %v586
    %v683 = vpop.f32.mrf.mxu0
    %v684 = vadd.f32 0.0, %v683
    %v685 = vpop.f32.mrf.mxu0
    %v686 = vadd.f32 0.0, %v685
    %687 = vmatmul.bf16.gmra.mxu0 %v587
    %v688 = vpop.f32.mrf.mxu0
    %v689 = vadd.f32 0.0, %v688
    %v690 = vpop.f32.mrf.mxu0
    %v691 = vadd.f32 0.0, %v690
    %692 = vmatmul.bf16.gmra.mxu0 %v588
    %v693 = vpop.f32.mrf.mxu0
    %v694 = vadd.f32 0.0, %v693
    %v695 = vpop.f32.mrf.mxu0
    %v696 = vadd.f32 0.0, %v695
    %697 = vmatmul.bf16.gmra.mxu0 %v589
    %v698 = vpop.f32.mrf.mxu0
    %v699 = vadd.f32 0.0, %v698
    %v700 = vpop.f32.mrf.mxu0
    %v701 = vadd.f32 0.0, %v700
    %702 = vdwg.mxu0
    %v703 = vmul.f32 %v380, %v664
    %v704 = vmul.f32 %v385, %v666
    %v705 = vmul.f32 %v390, %v669
    %v706 = vmul.f32 %v395, %v671
    %v707 = vmul.f32 %v400, %v674
    %v708 = vmul.f32 %v405, %v676
    %v709 = vmul.f32 %v410, %v679
    %v710 = vmul.f32 %v415, %v681
    %v711 = vmul.f32 %v420, %v684
    %v712 = vmul.f32 %v425, %v686
    %v713 = vmul.f32 %v430, %v689
    %v714 = vmul.f32 %v435, %v691
    %v715 = vmul.f32 %v440, %v694
    %v716 = vmul.f32 %v445, %v696
    %v717 = vmul.f32 %v450, %v699
    %v718 = vmul.f32 %v455, %v701
    %v719 = vpack.c.bf16 %v704, %v703
    %v720 = vpack.c.bf16 %v706, %v705
    %v721 = vpack.c.bf16 %v708, %v707
    %v722 = vpack.c.bf16 %v710, %v709
    %v723 = vpack.c.bf16 %v712, %v711
    %v724 = vpack.c.bf16 %v714, %v713
    %v725 = vpack.c.bf16 %v716, %v715
    %v726 = vpack.c.bf16 %v718, %v717
    %727 = vmatpush.bf16.msra.mxu0 %v726
    %728 = vmatpush.bf16.msra.mxu0 %v725
    %729 = vmatpush.bf16.msra.mxu0 %v724
    %730 = vmatpush.bf16.msra.mxu0 %v723
    %731 = vmatpush.bf16.msra.mxu0 %v722
    %732 = vmatpush.bf16.msra.mxu0 %v721
    %733 = vmatpush.bf16.msra.mxu0 %v720
    %734 = vmatpush.bf16.msra.mxu0 %v719
    %735 = vmatmul.bf16.gmra.mxu0 %v176
    %v736 = vpop.f32.mrf.mxu0
    %v737 = vadd.f32 0.0, %v736
    %v738 = vpop.f32.mrf.mxu0
    %v739 = vadd.f32 0.0, %v738
    %740 = vmatmul.bf16.gmra.mxu0 %v177
    %v741 = vpop.f32.mrf.mxu0
    %v742 = vadd.f32 0.0, %v741
    %v743 = vpop.f32.mrf.mxu0
    %v744 = vadd.f32 0.0, %v743
    %745 = vmatmul.bf16.gmra.mxu0 %v178
    %v746 = vpop.f32.mrf.mxu0
    %v747 = vadd.f32 0.0, %v746
    %v748 = vpop.f32.mrf.mxu0
    %v749 = vadd.f32 0.0, %v748
    %750 = vmatmul.bf16.gmra.mxu0 %v179
    %v751 = vpop.f32.mrf.mxu0
    %v752 = vadd.f32 0.0, %v751
    %v753 = vpop.f32.mrf.mxu0
    %v754 = vadd.f32 0.0, %v753
    %755 = vmatmul.bf16.gmra.mxu0 %v180
    %v756 = vpop.f32.mrf.mxu0
    %v757 = vadd.f32 0.0, %v756
    %v758 = vpop.f32.mrf.mxu0
    %v759 = vadd.f32 0.0, %v758
    %760 = vmatmul.bf16.gmra.mxu0 %v181
    %v761 = vpop.f32.mrf.mxu0
    %v762 = vadd.f32 0.0, %v761
    %v763 = vpop.f32.mrf.mxu0
    %v764 = vadd.f32 0.0, %v763
    %765 = vmatmul.bf16.gmra.mxu0 %v182
    %v766 = vpop.f32.mrf.mxu0
    %v767 = vadd.f32 0.0, %v766
    %v768 = vpop.f32.mrf.mxu0
    %v769 = vadd.f32 0.0, %v768
    %770 = vmatmul.bf16.gmra.mxu0 %v183
    %v771 = vpop.f32.mrf.mxu0
    %v772 = vadd.f32 0.0, %v771
    %v773 = vpop.f32.mrf.mxu0
    %v774 = vadd.f32 0.0, %v773
    %775 = vdwg.mxu0
    %v776 = vmul.f32 %v380, %v737
    %v777 = vmul.f32 %v385, %v739
    %v778 = vmul.f32 %v390, %v742
    %v779 = vmul.f32 %v395, %v744
    %v780 = vmul.f32 %v400, %v747
    %v781 = vmul.f32 %v405, %v749
    %v782 = vmul.f32 %v410, %v752
    %v783 = vmul.f32 %v415, %v754
    %v784 = vmul.f32 %v420, %v757
    %v785 = vmul.f32 %v425, %v759
    %v786 = vmul.f32 %v430, %v762
    %v787 = vmul.f32 %v435, %v764
    %v788 = vmul.f32 %v440, %v767
    %v789 = vmul.f32 %v445, %v769
    %v790 = vmul.f32 %v450, %v772
    %v791 = vmul.f32 %v455, %v774
    %v792 = vld [vmem:[%s7] sm:$0x1]
    %v794 = vperm.slane %v792, 0
    %v796 = vadd.f32 %v776, %v794
    %v797 = vadd.f32 %v777, %v794
    %v798 = vadd.f32 %v778, %v794
    %v799 = vadd.f32 %v779, %v794
    %v800 = vadd.f32 %v780, %v794
    %v801 = vadd.f32 %v781, %v794
    %v802 = vadd.f32 %v782, %v794
    %v803 = vadd.f32 %v783, %v794
    %v804 = vadd.f32 %v784, %v794
    %v805 = vadd.f32 %v785, %v794
    %v806 = vadd.f32 %v786, %v794
    %v807 = vadd.f32 %v787, %v794
    %v808 = vadd.f32 %v788, %v794
    %v809 = vadd.f32 %v789, %v794
    %v810 = vadd.f32 %v790, %v794
    %v811 = vadd.f32 %v791, %v794
    %v812 = vmax.f32 %v796, 0.0
    %v813 = vmax.f32 %v797, 0.0
    %v814 = vmax.f32 %v798, 0.0
    %v815 = vmax.f32 %v799, 0.0
    %v816 = vmax.f32 %v800, 0.0
    %v817 = vmax.f32 %v801, 0.0
    %v818 = vmax.f32 %v802, 0.0
    %v819 = vmax.f32 %v803, 0.0
    %v820 = vmax.f32 %v804, 0.0
    %v821 = vmax.f32 %v805, 0.0
    %v822 = vmax.f32 %v806, 0.0
    %v823 = vmax.f32 %v807, 0.0
    %v824 = vmax.f32 %v808, 0.0
    %v825 = vmax.f32 %v809, 0.0
    %v826 = vmax.f32 %v810, 0.0
    %v827 = vmax.f32 %v811, 0.0
    %v828 = vpack.c.bf16 %v813, %v812
    %v829 = vpack.c.bf16 %v815, %v814
    %v830 = vpack.c.bf16 %v817, %v816
    %v831 = vpack.c.bf16 %v819, %v818
    %v832 = vpack.c.bf16 %v821, %v820
    %v833 = vpack.c.bf16 %v823, %v822
    %v834 = vpack.c.bf16 %v825, %v824
    %v835 = vpack.c.bf16 %v827, %v826
    %v836 = vld [vmem:[#allocation8] sm:$0xf]
    %v837 = vld [vmem:[#allocation8 + $0x4] sm:$0xf]
    %v838 = vld [vmem:[#allocation8 + $0x8] sm:$0xf]
    %v839 = vld [vmem:[#allocation8 + $0xc] sm:$0xf]
    %v840 = vld [vmem:[#allocation8 + $0x10] sm:$0xf]
    %v841 = vld [vmem:[#allocation8 + $0x14] sm:$0xf]
    %v842 = vld [vmem:[#allocation8 + $0x18] sm:$0xf]
    %v843 = vld [vmem:[#allocation8 + $0x1c] sm:$0xf]
    %v844 = vld [vmem:[#allocation8 + $0x20] sm:$0xf]
    %v845 = vld [vmem:[#allocation8 + $0x24] sm:$0xf]
    %v846 = vld [vmem:[#allocation8 + $0x28] sm:$0xf]
    %v847 = vld [vmem:[#allocation8 + $0x2c] sm:$0xf]
    %v848 = vld [vmem:[#allocation8 + $0x30] sm:$0xf]
    %v849 = vld [vmem:[#allocation8 + $0x34] sm:$0xf]
    %v850 = vld [vmem:[#allocation8 + $0x38] sm:$0xf]
    %v851 = vld [vmem:[#allocation8 + $0x3c] sm:$0xf]
    %v868 = vunpack.c.l.b16 %v836
    %v869 = vunpack.c.l.b16 %v837
    %v870 = vunpack.c.l.b16 %v838
    %v871 = vunpack.c.l.b16 %v839
    %v872 = vunpack.c.l.b16 %v840
    %v873 = vunpack.c.l.b16 %v841
    %v874 = vunpack.c.l.b16 %v842
    %v875 = vunpack.c.l.b16 %v843
    %v876 = vunpack.c.l.b16 %v844
    %v877 = vunpack.c.l.b16 %v845
    %v878 = vunpack.c.l.b16 %v846
    %v879 = vunpack.c.l.b16 %v847
    %v880 = vunpack.c.l.b16 %v848
    %v881 = vunpack.c.l.b16 %v849
    %v882 = vunpack.c.l.b16 %v850
    %v883 = vunpack.c.l.b16 %v851
    %v884 = vpack.c.b16 %v869, %v868
    %v885 = vpack.c.b16 %v871, %v870
    %v886 = vpack.c.b16 %v873, %v872
    %v887 = vpack.c.b16 %v875, %v874
    %v888 = vpack.c.b16 %v877, %v876
    %v889 = vpack.c.b16 %v879, %v878
    %v890 = vpack.c.b16 %v881, %v880
    %v891 = vpack.c.b16 %v883, %v882
    %900 = vmatpush.bf16.msra.mxu0 %v891
    %901 = vmatpush.bf16.msra.mxu0 %v890
    %902 = vmatpush.bf16.msra.mxu0 %v889
    %903 = vmatpush.bf16.msra.mxu0 %v888
    %904 = vmatpush.bf16.msra.mxu0 %v887
    %905 = vmatpush.bf16.msra.mxu0 %v886
    %906 = vmatpush.bf16.msra.mxu0 %v885
    %907 = vmatpush.bf16.msra.mxu0 %v884
    %908 = vmatmul.bf16.gmra.mxu0 %v828
    %v909 = vpop.f32.mrf.mxu0
    %v910 = vadd.f32 0.0, %v909
    %v911 = vpop.f32.mrf.mxu0
    %v912 = vadd.f32 0.0, %v911
    %913 = vmatmul.bf16.gmra.mxu0 %v829
    %v914 = vpop.f32.mrf.mxu0
    %v915 = vadd.f32 0.0, %v914
    %v916 = vpop.f32.mrf.mxu0
    %v917 = vadd.f32 0.0, %v916
    %918 = vmatmul.bf16.gmra.mxu0 %v830
    %v919 = vpop.f32.mrf.mxu0
    %v920 = vadd.f32 0.0, %v919
    %v921 = vpop.f32.mrf.mxu0
    %v922 = vadd.f32 0.0, %v921
    %923 = vmatmul.bf16.gmra.mxu0 %v831
    %v924 = vpop.f32.mrf.mxu0
    %v925 = vadd.f32 0.0, %v924
    %v926 = vpop.f32.mrf.mxu0
    %v927 = vadd.f32 0.0, %v926
    %928 = vmatmul.bf16.gmra.mxu0 %v832
    %v929 = vpop.f32.mrf.mxu0
    %v930 = vadd.f32 0.0, %v929
    %v931 = vpop.f32.mrf.mxu0
    %v932 = vadd.f32 0.0, %v931
    %933 = vmatmul.bf16.gmra.mxu0 %v833
    %v934 = vpop.f32.mrf.mxu0
    %v935 = vadd.f32 0.0, %v934
    %v936 = vpop.f32.mrf.mxu0
    %v937 = vadd.f32 0.0, %v936
    %938 = vmatmul.bf16.gmra.mxu0 %v834
    %v939 = vpop.f32.mrf.mxu0
    %v940 = vadd.f32 0.0, %v939
    %v941 = vpop.f32.mrf.mxu0
    %v942 = vadd.f32 0.0, %v941
    %943 = vmatmul.bf16.gmra.mxu0 %v835
    %v944 = vpop.f32.mrf.mxu0
    %v945 = vadd.f32 0.0, %v944
    %v946 = vpop.f32.mrf.mxu0
    %v947 = vadd.f32 0.0, %v946
    %948 = vdwg.mxu0
    %v949 = vmul.f32 %v380, %v910
    %v950 = vmul.f32 %v385, %v912
    %v951 = vmul.f32 %v390, %v915
    %v952 = vmul.f32 %v395, %v917
    %v953 = vmul.f32 %v400, %v920
    %v954 = vmul.f32 %v405, %v922
    %v955 = vmul.f32 %v410, %v925
    %v956 = vmul.f32 %v415, %v927
    %v957 = vmul.f32 %v420, %v930
    %v958 = vmul.f32 %v425, %v932
    %v959 = vmul.f32 %v430, %v935
    %v960 = vmul.f32 %v435, %v937
    %v961 = vmul.f32 %v440, %v940
    %v962 = vmul.f32 %v445, %v942
    %v963 = vmul.f32 %v450, %v945
    %v964 = vmul.f32 %v455, %v947
    %v965 = vpack.c.bf16 %v950, %v949
    %v966 = vpack.c.bf16 %v952, %v951
    %v967 = vpack.c.bf16 %v954, %v953
    %v968 = vpack.c.bf16 %v956, %v955
    %v969 = vpack.c.bf16 %v958, %v957
    %v970 = vpack.c.bf16 %v960, %v959
    %v971 = vpack.c.bf16 %v962, %v961
    %v972 = vpack.c.bf16 %v964, %v963
    %973 = vmatpush.bf16.msra.mxu0 %v972
    %974 = vmatpush.bf16.msra.mxu0 %v971
    %975 = vmatpush.bf16.msra.mxu0 %v970
    %976 = vmatpush.bf16.msra.mxu0 %v969
    %977 = vmatpush.bf16.msra.mxu0 %v968
    %978 = vmatpush.bf16.msra.mxu0 %v967
    %979 = vmatpush.bf16.msra.mxu0 %v966
    %980 = vmatpush.bf16.msra.mxu0 %v965
    %981 = vmatmul.bf16.gmra.mxu0 %v176
    %v982 = vpop.f32.mrf.mxu0
    %v983 = vadd.f32 0.0, %v982
    %v984 = vpop.f32.mrf.mxu0
    %v985 = vadd.f32 0.0, %v984
    %986 = vmatmul.bf16.gmra.mxu0 %v177
    %v987 = vpop.f32.mrf.mxu0
    %v988 = vadd.f32 0.0, %v987
    %v989 = vpop.f32.mrf.mxu0
    %v990 = vadd.f32 0.0, %v989
    %991 = vmatmul.bf16.gmra.mxu0 %v178
    %v992 = vpop.f32.mrf.mxu0
    %v993 = vadd.f32 0.0, %v992
    %v994 = vpop.f32.mrf.mxu0
    %v995 = vadd.f32 0.0, %v994
    %996 = vmatmul.bf16.gmra.mxu0 %v179
    %v997 = vpop.f32.mrf.mxu0
    %v998 = vadd.f32 0.0, %v997
    %v999 = vpop.f32.mrf.mxu0
    %v1000 = vadd.f32 0.0, %v999
    %1001 = vmatmul.bf16.gmra.mxu0 %v180
    %v1002 = vpop.f32.mrf.mxu0
    %v1003 = vadd.f32 0.0, %v1002
    %v1004 = vpop.f32.mrf.mxu0
    %v1005 = vadd.f32 0.0, %v1004
    %1006 = vmatmul.bf16.gmra.mxu0 %v181
    %v1007 = vpop.f32.mrf.mxu0
    %v1008 = vadd.f32 0.0, %v1007
    %v1009 = vpop.f32.mrf.mxu0
    %v1010 = vadd.f32 0.0, %v1009
    %1011 = vmatmul.bf16.gmra.mxu0 %v182
    %v1012 = vpop.f32.mrf.mxu0
    %v1013 = vadd.f32 0.0, %v1012
    %v1014 = vpop.f32.mrf.mxu0
    %v1015 = vadd.f32 0.0, %v1014
    %1016 = vmatmul.bf16.gmra.mxu0 %v183
    %v1017 = vpop.f32.mrf.mxu0
    %v1018 = vadd.f32 0.0, %v1017
    %v1019 = vpop.f32.mrf.mxu0
    %v1020 = vadd.f32 0.0, %v1019
    %1021 = vdwg.mxu0
    %v1022 = vmul.f32 %v380, %v983
    %v1023 = vmul.f32 %v385, %v985
    %v1024 = vmul.f32 %v390, %v988
    %v1025 = vmul.f32 %v395, %v990
    %v1026 = vmul.f32 %v400, %v993
    %v1027 = vmul.f32 %v405, %v995
    %v1028 = vmul.f32 %v410, %v998
    %v1029 = vmul.f32 %v415, %v1000
    %v1030 = vmul.f32 %v420, %v1003
    %v1031 = vmul.f32 %v425, %v1005
    %v1032 = vmul.f32 %v430, %v1008
    %v1033 = vmul.f32 %v435, %v1010
    %v1034 = vmul.f32 %v440, %v1013
    %v1035 = vmul.f32 %v445, %v1015
    %v1036 = vmul.f32 %v450, %v1018
    %v1037 = vmul.f32 %v455, %v1020
    %v1038 = vld [vmem:[%s9] sm:$0x1]
    %v1040 = vperm.slane %v1038, 0
    %v1042 = vadd.f32 %v1022, %v1040
    %v1043 = vadd.f32 %v1023, %v1040
    %v1044 = vadd.f32 %v1024, %v1040
    %v1045 = vadd.f32 %v1025, %v1040
    %v1046 = vadd.f32 %v1026, %v1040
    %v1047 = vadd.f32 %v1027, %v1040
    %v1048 = vadd.f32 %v1028, %v1040
    %v1049 = vadd.f32 %v1029, %v1040
    %v1050 = vadd.f32 %v1030, %v1040
    %v1051 = vadd.f32 %v1031, %v1040
    %v1052 = vadd.f32 %v1032, %v1040
    %v1053 = vadd.f32 %v1033, %v1040
    %v1054 = vadd.f32 %v1034, %v1040
    %v1055 = vadd.f32 %v1035, %v1040
    %v1056 = vadd.f32 %v1036, %v1040
    %v1057 = vadd.f32 %v1037, %v1040
    %v1058 = vpack.c.bf16 %v1043, %v1042
    %v1059 = vpack.c.bf16 %v1045, %v1044
    %v1060 = vpack.c.bf16 %v1047, %v1046
    %v1061 = vpack.c.bf16 %v1049, %v1048
    %v1062 = vpack.c.bf16 %v1051, %v1050
    %v1063 = vpack.c.bf16 %v1053, %v1052
    %v1064 = vpack.c.bf16 %v1055, %v1054
    %v1065 = vpack.c.bf16 %v1057, %v1056
    %v1066 = vld [vmem:[#allocation5] sm:$0xf]
    %1067 = vmatpush.bf16.msra.mxu0 %v1065
    %1068 = vmatpush.bf16.msra.mxu0 %v1064
    %1069 = vmatpush.bf16.msra.mxu0 %v1063
    %1070 = vmatpush.bf16.msra.mxu0 %v1062
    %1071 = vmatpush.bf16.msra.mxu0 %v1061
    %1072 = vmatpush.bf16.msra.mxu0 %v1060
    %1073 = vmatpush.bf16.msra.mxu0 %v1059
    %1074 = vmatpush.bf16.msra.mxu0 %v1058
    %1075 = vmatmul.bf16.gmra.mxu0 %v1066
    %v1076 = vpop.f32.mrf.mxu0
    %v1077 = vadd.f32 0.0, %v1076
    %v1078 = vpop.f32.mrf.mxu0
    %1079 = vdwg.mxu0
    %v1080 = vpack.c.bf16 %v1077, %v1077
    %v1081 = vld [vmem:[#allocation10] sm:$0xf]
    %v1082 = vld [vmem:[#allocation10 + $0x4] sm:$0xf]
    %v1083 = vld [vmem:[#allocation10 + $0x8] sm:$0xf]
    %v1084 = vld [vmem:[#allocation10 + $0xc] sm:$0xf]
    %v1085 = vld [vmem:[#allocation10 + $0x10] sm:$0xf]
    %v1086 = vld [vmem:[#allocation10 + $0x14] sm:$0xf]
    %v1087 = vld [vmem:[#allocation10 + $0x18] sm:$0xf]
    %v1088 = vld [vmem:[#allocation10 + $0x1c] sm:$0xf]
    %v1089 = vld [vmem:[#allocation10 + $0x20] sm:$0xf]
    %v1090 = vld [vmem:[#allocation10 + $0x24] sm:$0xf]
    %v1091 = vld [vmem:[#allocation10 + $0x28] sm:$0xf]
    %v1092 = vld [vmem:[#allocation10 + $0x2c] sm:$0xf]
    %v1093 = vld [vmem:[#allocation10 + $0x30] sm:$0xf]
    %v1094 = vld [vmem:[#allocation10 + $0x34] sm:$0xf]
    %v1095 = vld [vmem:[#allocation10 + $0x38] sm:$0xf]
    %v1096 = vld [vmem:[#allocation10 + $0x3c] sm:$0xf]
    %v1097 = vld [vmem:[%s11] sm:$0x1]
    %v1099 = vperm.slane %v1097, 0
    %v1117 = vunpack.c.l.b16 %v1081
    %v1118 = vunpack.c.l.b16 %v1082
    %v1119 = vunpack.c.l.b16 %v1083
    %v1120 = vunpack.c.l.b16 %v1084
    %v1121 = vunpack.c.l.b16 %v1085
    %v1122 = vunpack.c.l.b16 %v1086
    %v1123 = vunpack.c.l.b16 %v1087
    %v1124 = vunpack.c.l.b16 %v1088
    %v1125 = vunpack.c.l.b16 %v1089
    %v1126 = vunpack.c.l.b16 %v1090
    %v1127 = vunpack.c.l.b16 %v1091
    %v1128 = vunpack.c.l.b16 %v1092
    %v1129 = vunpack.c.l.b16 %v1093
    %v1130 = vunpack.c.l.b16 %v1094
    %v1131 = vunpack.c.l.b16 %v1095
    %v1132 = vunpack.c.l.b16 %v1096
    %v1133 = vpack.c.b16 %v1118, %v1117
    %v1134 = vpack.c.b16 %v1120, %v1119
    %v1135 = vpack.c.b16 %v1122, %v1121
    %v1136 = vpack.c.b16 %v1124, %v1123
    %v1137 = vpack.c.b16 %v1126, %v1125
    %v1138 = vpack.c.b16 %v1128, %v1127
    %v1139 = vpack.c.b16 %v1130, %v1129
    %v1140 = vpack.c.b16 %v1132, %v1131
    %1149 = vmatpush.bf16.msra.mxu0 %v1140
    %1150 = vmatpush.bf16.msra.mxu0 %v1139
    %1151 = vmatpush.bf16.msra.mxu0 %v1138
    %1152 = vmatpush.bf16.msra.mxu0 %v1137
    %1153 = vmatpush.bf16.msra.mxu0 %v1136
    %1154 = vmatpush.bf16.msra.mxu0 %v1135
    %1155 = vmatpush.bf16.msra.mxu0 %v1134
    %1156 = vmatpush.bf16.msra.mxu0 %v1133
    %1157 = vmatmul.bf16.gmra.mxu0 %v1080
    %v1158 = vpop.f32.mrf.mxu0
    %v1159 = vadd.f32 %v1099, %v1158
    %v1160 = vpop.f32.mrf.mxu0
    %1161 = vdwg.mxu0
    %v1162 = vmax.f32 %v1159, 0.0
    %v1163 = vpack.c.bf16 %v1162, %v1162
    %v1164 = vld [vmem:[#allocation11] sm:$0xf]
    %v1165 = vld [vmem:[#allocation11 + $0x4] sm:$0xf]
    %v1166 = vld [vmem:[#allocation11 + $0x8] sm:$0xf]
    %v1167 = vld [vmem:[#allocation11 + $0xc] sm:$0xf]
    %v1168 = vld [vmem:[#allocation11 + $0x10] sm:$0xf]
    %v1169 = vld [vmem:[#allocation11 + $0x14] sm:$0xf]
    %v1170 = vld [vmem:[#allocation11 + $0x18] sm:$0xf]
    %v1171 = vld [vmem:[#allocation11 + $0x1c] sm:$0xf]
    %v1172 = vld [vmem:[#allocation11 + $0x20] sm:$0xf]
    %v1173 = vld [vmem:[#allocation11 + $0x24] sm:$0xf]
    %v1174 = vld [vmem:[#allocation11 + $0x28] sm:$0xf]
    %v1175 = vld [vmem:[#allocation11 + $0x2c] sm:$0xf]
    %v1176 = vld [vmem:[#allocation11 + $0x30] sm:$0xf]
    %v1177 = vld [vmem:[#allocation11 + $0x34] sm:$0xf]
    %v1178 = vld [vmem:[#allocation11 + $0x38] sm:$0xf]
    %v1179 = vld [vmem:[#allocation11 + $0x3c] sm:$0xf]
    %v1180 = vld [vmem:[%s13] sm:$0x1]
    %v1182 = vperm.slane %v1180, 0
    %v1200 = vunpack.c.l.b16 %v1164
    %v1201 = vunpack.c.l.b16 %v1165
    %v1202 = vunpack.c.l.b16 %v1166
    %v1203 = vunpack.c.l.b16 %v1167
    %v1204 = vunpack.c.l.b16 %v1168
    %v1205 = vunpack.c.l.b16 %v1169
    %v1206 = vunpack.c.l.b16 %v1170
    %v1207 = vunpack.c.l.b16 %v1171
    %v1208 = vunpack.c.l.b16 %v1172
    %v1209 = vunpack.c.l.b16 %v1173
    %v1210 = vunpack.c.l.b16 %v1174
    %v1211 = vunpack.c.l.b16 %v1175
    %v1212 = vunpack.c.l.b16 %v1176
    %v1213 = vunpack.c.l.b16 %v1177
    %v1214 = vunpack.c.l.b16 %v1178
    %v1215 = vunpack.c.l.b16 %v1179
    %v1216 = vpack.c.b16 %v1201, %v1200
    %v1217 = vpack.c.b16 %v1203, %v1202
    %v1218 = vpack.c.b16 %v1205, %v1204
    %v1219 = vpack.c.b16 %v1207, %v1206
    %v1220 = vpack.c.b16 %v1209, %v1208
    %v1221 = vpack.c.b16 %v1211, %v1210
    %v1222 = vpack.c.b16 %v1213, %v1212
    %v1223 = vpack.c.b16 %v1215, %v1214
    %1232 = vmatpush.bf16.msra.mxu0 %v1223
    %1233 = vmatpush.bf16.msra.mxu0 %v1222
    %1234 = vmatpush.bf16.msra.mxu0 %v1221
    %1235 = vmatpush.bf16.msra.mxu0 %v1220
    %1236 = vmatpush.bf16.msra.mxu0 %v1219
    %1237 = vmatpush.bf16.msra.mxu0 %v1218
    %1238 = vmatpush.bf16.msra.mxu0 %v1217
    %1239 = vmatpush.bf16.msra.mxu0 %v1216
    %1240 = vmatmul.bf16.gmra.mxu0 %v1163
    %v1241 = vpop.f32.mrf.mxu0
    %v1242 = vadd.f32 %v1182, %v1241
    %v1243 = vpop.f32.mrf.mxu0
    %1244 = vdwg.mxu0
    %1245 = vst [vmem:[#allocation13] sm:$0xff] %v1242
    // Predicated region
    $region82: #{tpu_custom_call.1} parent=1 // pred_check
      _
    $region83: #{tpu_custom_call.1} parent=1 // pred_check_branch
      %1247 = sbr.rel (0) target = $region85
    $region84: #{tpu_custom_call.1} parent=1 // pred_region
      %1249 = vsyncadd [#allocation4], 0
      %s1251 = sshll.u32 [#allocation13], 4
      %s1252 = int_to_ptr.vmem [resolvable:$true] %s1251
      %s1253 = sshll.u32 %s14, 4
      %s1254 = int_to_ptr.hbm [resolvable:$true] %s1253
      %1256 = dma.vmem_to_hbm [thread:$0]  %s1252, 128, %s1254, [#allocation4]
    $region85: #{tpu_custom_call.1} parent=1 // pred_fallthru
      _
    // Predicated region
    $region86: #{tpu_custom_call.1} parent=1 // pred_check
      _
    $region87: #{tpu_custom_call.1} parent=1 // pred_check_branch
      %1258 = sbr.rel (0) target = $region89
    $region88: #{tpu_custom_call.1} parent=1 // pred_region
      %1260 = dma.done [#allocation4], 128
    $region89: #{tpu_custom_call.1} parent=1 // pred_fallthru
      _
    %1261 = vsyncpa [#allocation3], 1
    %1262 = vsyncpa [#allocation6], 1
    %1263 = vsyncpa [#allocation9], 1
    %1264 = vsyncpa [#allocation12], 1
    %1265 = vsyncpa [#allocation4], 1

</llo_original>
